<compile_context>
chip_gen: v5e
topology: v5e:2x2
jax: 0.10.0
libtpu: 0.0.40
codegen_flags: <defaults>
</compile_context>

<pallas_src>
from functools import partial

import jax
import jax.numpy as jnp
from jax.experimental import pallas as pl
from jax.experimental.pallas import tpu as pltpu

EPS = 1e-6
NEG_SLOPE = 0.1


# ------------------------------ Pallas kernel ------------------------------- #

def _layer_norm_c(x, w, b):
    # x: (C, L); LayerNorm2d = normalize over channels (axis 0).
    mu = jnp.mean(x, axis=0, keepdims=True)
    xc = x - mu
    var = jnp.mean(xc * xc, axis=0, keepdims=True)
    return xc * jax.lax.rsqrt(var + EPS) * w + b


def iam_kernel(W, L,
               x_ref, cvec_ref, w5_ref, w1p_ref, ca_ref, wc1_ref, bc1_ref,
               wc2_ref, mask_ref, o_ref):
    x = x_ref[0]                                    # (C, L) f32
    C = x.shape[0]
    half, c4 = C // 2, 4 * C

    cv = cvec_ref[...]                              # (C, 8) packed constants
    ln1_w, ln1_b = cv[:, 0:1], cv[:, 1:2]
    b5, b1       = cv[:, 2:3], cv[:, 3:4]
    ln2_w, ln2_b = cv[:, 4:5], cv[:, 5:6]
    bd2, bc2     = cv[:, 6:7], cv[:, 7:8]

    # ---------------- SIM: LN -> 5x5 conv -> gate -> 1x1 -> +x -------------- #
    ln1 = _layer_norm_c(x, ln1_w, ln1_b)
    masks = mask_ref[...]                           # (25, L) 0/1 boundary masks

    taps = []
    for ky in range(5):
        for kx in range(5):
            dy, dx = ky - 2, kx - 2
            off = dy * W + dx
            if off == 0:
                taps.append(ln1)
            else:
                t_i = ky * 5 + kx
                shifted = pltpu.roll(ln1, (-off) % L, axis=1)   # XLU lane rotate
                taps.append(shifted * masks[t_i:t_i + 1, :])    # 1 VPU mul/tap
    patches = jnp.concatenate(taps, axis=0).astype(jnp.bfloat16)   # (25C, L)

    # single fused K=25C bf16 matmul (f32 accumulate); SimpleGate via a sublane
    # roll + a zero-padded 1x1 weight so no unaligned activation slicing.
    u = jnp.dot(w5_ref[...], patches, preferred_element_type=jnp.float32) + b5
    g = u * pltpu.roll(u, half, axis=0)             # rows [0, C/2) hold x1*x2
    v = jnp.dot(w1p_ref[...], g, preferred_element_type=jnp.float32) + b1
    y = v + x

    # ---------------- CIM: LN -> CA -> 1x1 -> gate -> 1x1 -> +y ------------- #
    t = _layer_norm_c(y, ln2_w, ln2_b)

    # channel attention squeeze/excite on VPU/XLU (avoids 1-lane MXU matvecs)
    ca = ca_ref[...]                                # (C+1, C): [wd1^T | wd2]; last row bd1
    wd1T, wd2 = ca[0:C, 0:half], ca[0:C, half:C]
    bd1 = ca[C:C + 1, 0:half]
    pooled = jnp.mean(t, axis=1, keepdims=True)                     # (C, 1)
    s = jnp.sum(wd1T * pooled, axis=0, keepdims=True) + bd1         # (1, C/2)
    s = jnp.where(s >= 0, s, NEG_SLOPE * s)                         # LeakyReLU
    z = jnp.sum(wd2 * s, axis=1, keepdims=True) + bd2               # (C, 1)
    t = t * jax.nn.sigmoid(z)

    # single fused (8C, C) bf16 matmul; gate split at 4C rows is sublane aligned
    u2 = jnp.dot(wc1_ref[...], t.astype(jnp.bfloat16),
                 preferred_element_type=jnp.float32) + bc1_ref[...]
    g2 = u2[:c4] * u2[c4:]
    v2 = jnp.dot(wc2_ref[...], g2, preferred_element_type=jnp.float32) + bc2
    o_ref[0] = v2 + y


# ------------------------------ host-side glue ------------------------------ #

def iam_forward(x_nchw, p, images_per_step=None):
    N, C, H, W = x_nchw.shape
    HW = H * W
    half = C // 2

    # Lane widening: several images per grid step amortize the ~0.35us/step
    # overhead + MXU weight re-pushes, but keep >=2 parallel steps when
    # possible so both v7x TensorCores stay busy.
    if images_per_step is None:
        ips = max(1, min(N, 1024 // max(HW, 1)))
        while ips > 1 and (N % ips or N // ips < 2):
            ips -= 1
    else:
        ips = images_per_step
    assert N % ips == 0
    G, L = N // ips, ips * HW

    f32 = lambda a: jnp.asarray(a, jnp.float32)
    vec = lambda a: f32(a).reshape(-1)

    x = f32(x_nchw).reshape(N, C, HW)
    if ips > 1:
        x = x.reshape(G, ips, C, HW).transpose(0, 2, 1, 3)
    x = x.reshape(G, C, L)

    # packed per-channel constants: (C, 8)
    cvec = jnp.stack([vec(p['ln1_w']), vec(p['ln1_b']), vec(p['b5']), vec(p['b1']),
                      vec(p['ln2_w']), vec(p['ln2_b']), vec(p['bd2']), vec(p['bc2'])],
                     axis=1)

    # SIM weights: OIHW -> (O, tap*I) so conv == W @ patches; bf16 MXU operand.
    w5_all = jnp.transpose(f32(p['w5']), (0, 2, 3, 1)).reshape(C, 25 * C)
    w5_all = w5_all.astype(jnp.bfloat16)
    # 1x1 weight zero-padded to (C, C): the gate-roll duplicate rows are ignored.
    w1_pad = jnp.concatenate(
        [f32(p['w1'])[:, :, 0, 0], jnp.zeros((C, C - half), jnp.float32)], axis=1)

    # CA pack: (C+1, C) = [wd1^T | wd2] with bd1 in the last row.
    ca = jnp.zeros((C + 1, C), jnp.float32)
    ca = ca.at[:C, :half].set(f32(p['wd1'])[:, :, 0, 0].T)
    ca = ca.at[:C, half:].set(f32(p['wd2'])[:, :, 0, 0])
    ca = ca.at[C, :half].set(vec(p['bd1']))

    wc1 = f32(p['wc1'])[:, :, 0, 0].astype(jnp.bfloat16)    # (8C, C) bf16
    bc1 = vec(p['bc1']).reshape(-1, 1)                      # (8C, 1)
    wc2 = f32(p['wc2'])[:, :, 0, 0]                         # (C, 4C)

    # 0/1 boundary masks for the 25 taps, tiled per image along lanes.
    lane = jnp.arange(HW)
    hi, wi = lane // W, lane % W
    rows = []
    for ky in range(5):
        for kx in range(5):
            dy, dx = ky - 2, kx - 2
            ok = jnp.ones((HW,), dtype=bool)
            if dy < 0:
                ok = ok & (hi >= -dy)
            if dy > 0:
                ok = ok & (hi < H - dy)
            if dx < 0:
                ok = ok & (wi >= -dx)
            if dx > 0:
                ok = ok & (wi < W - dx)
            rows.append(ok)
    masks = jnp.tile(jnp.stack(rows, axis=0).astype(jnp.float32), (1, ips))  # (25, L)

    consts = [cvec, w5_all, w1_pad, ca, wc1, bc1, wc2, masks]
    x_spec = pl.BlockSpec((1, C, L), lambda n: (n, 0, 0))
    const_specs = [pl.BlockSpec(c.shape, lambda n: (0, 0)) for c in consts]

    out = pl.pallas_call(
        partial(iam_kernel, W, L),
        out_shape=jax.ShapeDtypeStruct((G, C, L), jnp.float32),
        grid=(G,),
        in_specs=[x_spec] + const_specs,
        out_specs=x_spec,
        compiler_params=pltpu.CompilerParams(dimension_semantics=("parallel",)),
    )(x, *consts)

    if ips > 1:
        out = out.reshape(G, C, ips, HW).transpose(0, 2, 1, 3)
    return out.reshape(N, C, H, W)


# ------------------------- pure-JAX reference (NCHW) ------------------------ #

def reference_iam(x, p):
    def ln2d(x, w, b):
        mu = x.mean(axis=1, keepdims=True)
        var = ((x - mu) ** 2).mean(axis=1, keepdims=True)
        y = (x - mu) / jnp.sqrt(var + EPS)
        return w.reshape(1, -1, 1, 1) * y + b.reshape(1, -1, 1, 1)

    def conv(x, w, b, pad):
        out = jax.lax.conv_general_dilated(
            x, w, (1, 1), ((pad, pad), (pad, pad)),
            dimension_numbers=('NCHW', 'OIHW', 'NCHW'))
        return out + b.reshape(1, -1, 1, 1)

    def gate(x):
        c = x.shape[1] // 2
        return x[:, :c] * x[:, c:]

    # SIM
    t = ln2d(x, p['ln1_w'], p['ln1_b'])
    t = conv(t, p['w5'], p['b5'], 2)
    t = gate(t)
    t = conv(t, p['w1'], p['b1'], 0)
    y = t + x
    # CIM
    t = ln2d(y, p['ln2_w'], p['ln2_b'])
    pooled = t.mean(axis=(2, 3), keepdims=True)
    s = conv(pooled, p['wd1'], p['bd1'], 0)
    s = jnp.where(s >= 0, s, NEG_SLOPE * s)
    s = conv(s, p['wd2'], p['bd2'], 0)
    t = t * jax.nn.sigmoid(s)
    t = conv(t, p['wc1'], p['bc1'], 0)
    t = gate(t)
    t = conv(t, p['wc2'], p['bc2'], 0)
    return t + y


# --------------------------------- params ----------------------------------- #

def init_params(key, C):
    ks = jax.random.split(key, 12)

    def w(k, shape, scale=0.1):
        return (scale * jax.random.normal(k, shape)).astype(jnp.float32)

    return dict(
        ln1_w=jnp.ones((C,), jnp.float32), ln1_b=jnp.zeros((C,), jnp.float32),
        w5=w(ks[0], (C, C, 5, 5)), b5=w(ks[1], (C,), 0.05),
        w1=w(ks[2], (C, C // 2, 1, 1)), b1=w(ks[3], (C,), 0.05),
        ln2_w=jnp.ones((C,), jnp.float32), ln2_b=jnp.zeros((C,), jnp.float32),
        wd1=w(ks[4], (C // 2, C, 1, 1)), bd1=w(ks[5], (C // 2,), 0.05),
        wd2=w(ks[6], (C, C // 2, 1, 1)), bd2=w(ks[7], (C,), 0.05),
        wc1=w(ks[8], (8 * C, C, 1, 1)), bc1=w(ks[9], (8 * C,), 0.05),
        wc2=w(ks[10], (C, 4 * C, 1, 1)), bc2=w(ks[11], (C,), 0.05),
    )


if __name__ == "__main__":
    key = jax.random.PRNGKey(0)
    kx, kp = jax.random.split(key)
    N, C, H, W = 2, 8, 16, 16
    x = jax.random.normal(kx, (N, C, H, W), jnp.float32)
    params = init_params(kp, C)

    out = jax.block_until_ready(iam_forward(x, params))
    ref = reference_iam(x, params)

    assert out.shape == (N, C, H, W), out.shape
    err = float(jnp.max(jnp.abs(out - ref)))
    # Tolerance sized for bf16 MXU operands (the two big matmuls); an all-f32
    # variant of this kernel matches the reference to ~1e-5.
    if not jnp.allclose(out, ref, atol=2e-2, rtol=2e-2):
        raise AssertionError(f"mismatch vs reference, max abs err = {err}")
    print("KERNEL_OK")
</pallas_src>

<mosaic_0001>
module attributes {stable_mosaic.version = 11 : i64} {
  func.func @iam_kernel(%arg0: i32, %arg1: memref<1x8x256xf32, #tpu.memory_space<vmem>>, %arg2: memref<8x8xf32, #tpu.memory_space<vmem>>, %arg3: memref<8x200xbf16, #tpu.memory_space<vmem>>, %arg4: memref<8x8xf32, #tpu.memory_space<vmem>>, %arg5: memref<9x8xf32, #tpu.memory_space<vmem>>, %arg6: memref<64x8xbf16, #tpu.memory_space<vmem>>, %arg7: memref<64x1xf32, #tpu.memory_space<vmem>>, %arg8: memref<8x32xf32, #tpu.memory_space<vmem>>, %arg9: memref<25x256xf32, #tpu.memory_space<vmem>>, %arg10: memref<1x8x256xf32, #tpu.memory_space<vmem>>) attributes {dimension_semantics = [#tpu.dimension_semantics<parallel>], iteration_bounds = array<i64: 2>, scalar_prefetch = 0 : i64, scratch_operands = 0 : i64, tpu.core_type = #tpu.core_type<tc>, window_params = [{transform_indices = @transform_0, window_bounds = array<i64: 1, 8, 256>}, {pipeline_mode = #tpu.pipeline_mode<synchronous>, transform_indices = @transform_1, window_bounds = array<i64: 8, 8>}, {pipeline_mode = #tpu.pipeline_mode<synchronous>, transform_indices = @transform_2, window_bounds = array<i64: 8, 200>}, {pipeline_mode = #tpu.pipeline_mode<synchronous>, transform_indices = @transform_3, window_bounds = array<i64: 8, 8>}, {pipeline_mode = #tpu.pipeline_mode<synchronous>, transform_indices = @transform_4, window_bounds = array<i64: 9, 8>}, {pipeline_mode = #tpu.pipeline_mode<synchronous>, transform_indices = @transform_5, window_bounds = array<i64: 64, 8>}, {pipeline_mode = #tpu.pipeline_mode<synchronous>, transform_indices = @transform_6, window_bounds = array<i64: 64, 1>}, {pipeline_mode = #tpu.pipeline_mode<synchronous>, transform_indices = @transform_7, window_bounds = array<i64: 8, 32>}, {pipeline_mode = #tpu.pipeline_mode<synchronous>, transform_indices = @transform_8, window_bounds = array<i64: 25, 256>}, {transform_indices = @transform_9, window_bounds = array<i64: 1, 8, 256>}]} {
    %c0 = arith.constant 0 : index
    %c0_0 = arith.constant 0 : index
    %c0_1 = arith.constant 0 : index
    %0 = vector.load %arg1[%c0, %c0_0, %c0_1] : memref<1x8x256xf32, #tpu.memory_space<vmem>>, vector<1x8x256xf32>
    %1 = vector.shape_cast %0 : vector<1x8x256xf32> to vector<8x256xf32>
    %c0_2 = arith.constant 0 : index
    %c0_3 = arith.constant 0 : index
    %2 = vector.load %arg2[%c0_2, %c0_3] : memref<8x8xf32, #tpu.memory_space<vmem>>, vector<8x8xf32>
    %3 = vector.extract_strided_slice %2 {offsets = [0, 0], sizes = [8, 1], strides = [1, 1]} : vector<8x8xf32> to vector<8x1xf32>
    %4 = vector.extract_strided_slice %2 {offsets = [0, 1], sizes = [8, 1], strides = [1, 1]} : vector<8x8xf32> to vector<8x1xf32>
    %5 = vector.extract_strided_slice %2 {offsets = [0, 2], sizes = [8, 1], strides = [1, 1]} : vector<8x8xf32> to vector<8x1xf32>
    %6 = vector.extract_strided_slice %2 {offsets = [0, 3], sizes = [8, 1], strides = [1, 1]} : vector<8x8xf32> to vector<8x1xf32>
    %7 = vector.extract_strided_slice %2 {offsets = [0, 4], sizes = [8, 1], strides = [1, 1]} : vector<8x8xf32> to vector<8x1xf32>
    %8 = vector.extract_strided_slice %2 {offsets = [0, 5], sizes = [8, 1], strides = [1, 1]} : vector<8x8xf32> to vector<8x1xf32>
    %9 = vector.extract_strided_slice %2 {offsets = [0, 6], sizes = [8, 1], strides = [1, 1]} : vector<8x8xf32> to vector<8x1xf32>
    %10 = vector.extract_strided_slice %2 {offsets = [0, 7], sizes = [8, 1], strides = [1, 1]} : vector<8x8xf32> to vector<8x1xf32>
    %cst = arith.constant dense<0.000000e+00> : vector<256xf32>
    %11 = vector.multi_reduction <add>, %1, %cst [0] : vector<8x256xf32> to vector<256xf32>
    %12 = vector.shape_cast %11 : vector<256xf32> to vector<1x256xf32>
    %cst_4 = arith.constant 8.000000e+00 : f32
    %13 = vector.broadcast %cst_4 : f32 to vector<1x256xf32>
    %14 = arith.divf %12, %13 : vector<1x256xf32>
    %15 = vector.broadcast %14 : vector<1x256xf32> to vector<8x256xf32>
    %16 = arith.subf %1, %15 : vector<8x256xf32>
    %17 = arith.mulf %16, %16 : vector<8x256xf32>
    %cst_5 = arith.constant dense<0.000000e+00> : vector<256xf32>
    %18 = vector.multi_reduction <add>, %17, %cst_5 [0] : vector<8x256xf32> to vector<256xf32>
    %19 = vector.shape_cast %18 : vector<256xf32> to vector<1x256xf32>
    %cst_6 = arith.constant 8.000000e+00 : f32
    %20 = vector.broadcast %cst_6 : f32 to vector<1x256xf32>
    %21 = arith.divf %19, %20 : vector<1x256xf32>
    %cst_7 = arith.constant 9.99999997E-7 : f32
    %22 = vector.broadcast %cst_7 : f32 to vector<1x256xf32>
    %23 = arith.addf %21, %22 : vector<1x256xf32>
    %24 = math.rsqrt %23 : vector<1x256xf32>
    %25 = vector.broadcast %24 : vector<1x256xf32> to vector<8x256xf32>
    %26 = arith.mulf %16, %25 : vector<8x256xf32>
    %27 = vector.broadcast %3 : vector<8x1xf32> to vector<8x256xf32>
    %28 = arith.mulf %26, %27 : vector<8x256xf32>
    %29 = vector.broadcast %4 : vector<8x1xf32> to vector<8x256xf32>
    %30 = arith.addf %28, %29 : vector<8x256xf32>
    %c0_8 = arith.constant 0 : index
    %c0_9 = arith.constant 0 : index
    %31 = vector.load %arg9[%c0_8, %c0_9] : memref<25x256xf32, #tpu.memory_space<vmem>>, vector<25x256xf32>
    %c34_i32 = arith.constant 34 : i32
    %32 = tpu.dynamic_rotate %30 by %c34_i32 dim 1 : vector<8x256xf32>, i32 -> vector<8x256xf32>
    %33 = vector.extract_strided_slice %31 {offsets = [0, 0], sizes = [1, 256], strides = [1, 1]} : vector<25x256xf32> to vector<1x256xf32>
    %34 = vector.broadcast %33 : vector<1x256xf32> to vector<8x256xf32>
    %35 = arith.mulf %32, %34 : vector<8x256xf32>
    %c33_i32 = arith.constant 33 : i32
    %36 = tpu.dynamic_rotate %30 by %c33_i32 dim 1 : vector<8x256xf32>, i32 -> vector<8x256xf32>
    %37 = vector.extract_strided_slice %31 {offsets = [1, 0], sizes = [1, 256], strides = [1, 1]} : vector<25x256xf32> to vector<1x256xf32>
    %38 = vector.broadcast %37 : vector<1x256xf32> to vector<8x256xf32>
    %39 = arith.mulf %36, %38 : vector<8x256xf32>
    %c32_i32 = arith.constant 32 : i32
    %40 = tpu.dynamic_rotate %30 by %c32_i32 dim 1 : vector<8x256xf32>, i32 -> vector<8x256xf32>
    %41 = vector.extract_strided_slice %31 {offsets = [2, 0], sizes = [1, 256], strides = [1, 1]} : vector<25x256xf32> to vector<1x256xf32>
    %42 = vector.broadcast %41 : vector<1x256xf32> to vector<8x256xf32>
    %43 = arith.mulf %40, %42 : vector<8x256xf32>
    %c31_i32 = arith.constant 31 : i32
    %44 = tpu.dynamic_rotate %30 by %c31_i32 dim 1 : vector<8x256xf32>, i32 -> vector<8x256xf32>
    %45 = vector.extract_strided_slice %31 {offsets = [3, 0], sizes = [1, 256], strides = [1, 1]} : vector<25x256xf32> to vector<1x256xf32>
    %46 = vector.broadcast %45 : vector<1x256xf32> to vector<8x256xf32>
    %47 = arith.mulf %44, %46 : vector<8x256xf32>
    %c30_i32 = arith.constant 30 : i32
    %48 = tpu.dynamic_rotate %30 by %c30_i32 dim 1 : vector<8x256xf32>, i32 -> vector<8x256xf32>
    %49 = vector.extract_strided_slice %31 {offsets = [4, 0], sizes = [1, 256], strides = [1, 1]} : vector<25x256xf32> to vector<1x256xf32>
    %50 = vector.broadcast %49 : vector<1x256xf32> to vector<8x256xf32>
    %51 = arith.mulf %48, %50 : vector<8x256xf32>
    %c18_i32 = arith.constant 18 : i32
    %52 = tpu.dynamic_rotate %30 by %c18_i32 dim 1 : vector<8x256xf32>, i32 -> vector<8x256xf32>
    %53 = vector.extract_strided_slice %31 {offsets = [5, 0], sizes = [1, 256], strides = [1, 1]} : vector<25x256xf32> to vector<1x256xf32>
    %54 = vector.broadcast %53 : vector<1x256xf32> to vector<8x256xf32>
    %55 = arith.mulf %52, %54 : vector<8x256xf32>
    %c17_i32 = arith.constant 17 : i32
    %56 = tpu.dynamic_rotate %30 by %c17_i32 dim 1 : vector<8x256xf32>, i32 -> vector<8x256xf32>
    %57 = vector.extract_strided_slice %31 {offsets = [6, 0], sizes = [1, 256], strides = [1, 1]} : vector<25x256xf32> to vector<1x256xf32>
    %58 = vector.broadcast %57 : vector<1x256xf32> to vector<8x256xf32>
    %59 = arith.mulf %56, %58 : vector<8x256xf32>
    %c16_i32 = arith.constant 16 : i32
    %60 = tpu.dynamic_rotate %30 by %c16_i32 dim 1 : vector<8x256xf32>, i32 -> vector<8x256xf32>
    %61 = vector.extract_strided_slice %31 {offsets = [7, 0], sizes = [1, 256], strides = [1, 1]} : vector<25x256xf32> to vector<1x256xf32>
    %62 = vector.broadcast %61 : vector<1x256xf32> to vector<8x256xf32>
    %63 = arith.mulf %60, %62 : vector<8x256xf32>
    %c15_i32 = arith.constant 15 : i32
    %64 = tpu.dynamic_rotate %30 by %c15_i32 dim 1 : vector<8x256xf32>, i32 -> vector<8x256xf32>
    %65 = vector.extract_strided_slice %31 {offsets = [8, 0], sizes = [1, 256], strides = [1, 1]} : vector<25x256xf32> to vector<1x256xf32>
    %66 = vector.broadcast %65 : vector<1x256xf32> to vector<8x256xf32>
    %67 = arith.mulf %64, %66 : vector<8x256xf32>
    %c14_i32 = arith.constant 14 : i32
    %68 = tpu.dynamic_rotate %30 by %c14_i32 dim 1 : vector<8x256xf32>, i32 -> vector<8x256xf32>
    %69 = vector.extract_strided_slice %31 {offsets = [9, 0], sizes = [1, 256], strides = [1, 1]} : vector<25x256xf32> to vector<1x256xf32>
    %70 = vector.broadcast %69 : vector<1x256xf32> to vector<8x256xf32>
    %71 = arith.mulf %68, %70 : vector<8x256xf32>
    %c2_i32 = arith.constant 2 : i32
    %72 = tpu.dynamic_rotate %30 by %c2_i32 dim 1 : vector<8x256xf32>, i32 -> vector<8x256xf32>
    %73 = vector.extract_strided_slice %31 {offsets = [10, 0], sizes = [1, 256], strides = [1, 1]} : vector<25x256xf32> to vector<1x256xf32>
    %74 = vector.broadcast %73 : vector<1x256xf32> to vector<8x256xf32>
    %75 = arith.mulf %72, %74 : vector<8x256xf32>
    %c1_i32 = arith.constant 1 : i32
    %76 = tpu.dynamic_rotate %30 by %c1_i32 dim 1 : vector<8x256xf32>, i32 -> vector<8x256xf32>
    %77 = vector.extract_strided_slice %31 {offsets = [11, 0], sizes = [1, 256], strides = [1, 1]} : vector<25x256xf32> to vector<1x256xf32>
    %78 = vector.broadcast %77 : vector<1x256xf32> to vector<8x256xf32>
    %79 = arith.mulf %76, %78 : vector<8x256xf32>
    %c255_i32 = arith.constant 255 : i32
    %80 = tpu.dynamic_rotate %30 by %c255_i32 dim 1 : vector<8x256xf32>, i32 -> vector<8x256xf32>
    %81 = vector.extract_strided_slice %31 {offsets = [13, 0], sizes = [1, 256], strides = [1, 1]} : vector<25x256xf32> to vector<1x256xf32>
    %82 = vector.broadcast %81 : vector<1x256xf32> to vector<8x256xf32>
    %83 = arith.mulf %80, %82 : vector<8x256xf32>
    %c254_i32 = arith.constant 254 : i32
    %84 = tpu.dynamic_rotate %30 by %c254_i32 dim 1 : vector<8x256xf32>, i32 -> vector<8x256xf32>
    %85 = vector.extract_strided_slice %31 {offsets = [14, 0], sizes = [1, 256], strides = [1, 1]} : vector<25x256xf32> to vector<1x256xf32>
    %86 = vector.broadcast %85 : vector<1x256xf32> to vector<8x256xf32>
    %87 = arith.mulf %84, %86 : vector<8x256xf32>
    %c242_i32 = arith.constant 242 : i32
    %88 = tpu.dynamic_rotate %30 by %c242_i32 dim 1 : vector<8x256xf32>, i32 -> vector<8x256xf32>
    %89 = vector.extract_strided_slice %31 {offsets = [15, 0], sizes = [1, 256], strides = [1, 1]} : vector<25x256xf32> to vector<1x256xf32>
    %90 = vector.broadcast %89 : vector<1x256xf32> to vector<8x256xf32>
    %91 = arith.mulf %88, %90 : vector<8x256xf32>
    %c241_i32 = arith.constant 241 : i32
    %92 = tpu.dynamic_rotate %30 by %c241_i32 dim 1 : vector<8x256xf32>, i32 -> vector<8x256xf32>
    %93 = vector.extract_strided_slice %31 {offsets = [16, 0], sizes = [1, 256], strides = [1, 1]} : vector<25x256xf32> to vector<1x256xf32>
    %94 = vector.broadcast %93 : vector<1x256xf32> to vector<8x256xf32>
    %95 = arith.mulf %92, %94 : vector<8x256xf32>
    %c240_i32 = arith.constant 240 : i32
    %96 = tpu.dynamic_rotate %30 by %c240_i32 dim 1 : vector<8x256xf32>, i32 -> vector<8x256xf32>
    %97 = vector.extract_strided_slice %31 {offsets = [17, 0], sizes = [1, 256], strides = [1, 1]} : vector<25x256xf32> to vector<1x256xf32>
    %98 = vector.broadcast %97 : vector<1x256xf32> to vector<8x256xf32>
    %99 = arith.mulf %96, %98 : vector<8x256xf32>
    %c239_i32 = arith.constant 239 : i32
    %100 = tpu.dynamic_rotate %30 by %c239_i32 dim 1 : vector<8x256xf32>, i32 -> vector<8x256xf32>
    %101 = vector.extract_strided_slice %31 {offsets = [18, 0], sizes = [1, 256], strides = [1, 1]} : vector<25x256xf32> to vector<1x256xf32>
    %102 = vector.broadcast %101 : vector<1x256xf32> to vector<8x256xf32>
    %103 = arith.mulf %100, %102 : vector<8x256xf32>
    %c238_i32 = arith.constant 238 : i32
    %104 = tpu.dynamic_rotate %30 by %c238_i32 dim 1 : vector<8x256xf32>, i32 -> vector<8x256xf32>
    %105 = vector.extract_strided_slice %31 {offsets = [19, 0], sizes = [1, 256], strides = [1, 1]} : vector<25x256xf32> to vector<1x256xf32>
    %106 = vector.broadcast %105 : vector<1x256xf32> to vector<8x256xf32>
    %107 = arith.mulf %104, %106 : vector<8x256xf32>
    %c226_i32 = arith.constant 226 : i32
    %108 = tpu.dynamic_rotate %30 by %c226_i32 dim 1 : vector<8x256xf32>, i32 -> vector<8x256xf32>
    %109 = vector.extract_strided_slice %31 {offsets = [20, 0], sizes = [1, 256], strides = [1, 1]} : vector<25x256xf32> to vector<1x256xf32>
    %110 = vector.broadcast %109 : vector<1x256xf32> to vector<8x256xf32>
    %111 = arith.mulf %108, %110 : vector<8x256xf32>
    %c225_i32 = arith.constant 225 : i32
    %112 = tpu.dynamic_rotate %30 by %c225_i32 dim 1 : vector<8x256xf32>, i32 -> vector<8x256xf32>
    %113 = vector.extract_strided_slice %31 {offsets = [21, 0], sizes = [1, 256], strides = [1, 1]} : vector<25x256xf32> to vector<1x256xf32>
    %114 = vector.broadcast %113 : vector<1x256xf32> to vector<8x256xf32>
    %115 = arith.mulf %112, %114 : vector<8x256xf32>
    %c224_i32 = arith.constant 224 : i32
    %116 = tpu.dynamic_rotate %30 by %c224_i32 dim 1 : vector<8x256xf32>, i32 -> vector<8x256xf32>
    %117 = vector.extract_strided_slice %31 {offsets = [22, 0], sizes = [1, 256], strides = [1, 1]} : vector<25x256xf32> to vector<1x256xf32>
    %118 = vector.broadcast %117 : vector<1x256xf32> to vector<8x256xf32>
    %119 = arith.mulf %116, %118 : vector<8x256xf32>
    %c223_i32 = arith.constant 223 : i32
    %120 = tpu.dynamic_rotate %30 by %c223_i32 dim 1 : vector<8x256xf32>, i32 -> vector<8x256xf32>
    %121 = vector.extract_strided_slice %31 {offsets = [23, 0], sizes = [1, 256], strides = [1, 1]} : vector<25x256xf32> to vector<1x256xf32>
    %122 = vector.broadcast %121 : vector<1x256xf32> to vector<8x256xf32>
    %123 = arith.mulf %120, %122 : vector<8x256xf32>
    %c222_i32 = arith.constant 222 : i32
    %124 = tpu.dynamic_rotate %30 by %c222_i32 dim 1 : vector<8x256xf32>, i32 -> vector<8x256xf32>
    %125 = vector.extract_strided_slice %31 {offsets = [24, 0], sizes = [1, 256], strides = [1, 1]} : vector<25x256xf32> to vector<1x256xf32>
    %126 = vector.broadcast %125 : vector<1x256xf32> to vector<8x256xf32>
    %127 = arith.mulf %124, %126 : vector<8x256xf32>
    %128 = tpu.concatenate %35, %39, %43, %47, %51, %55, %59, %63, %67, %71, %75, %79, %30, %83, %87, %91 in 0 : vector<8x256xf32>, vector<8x256xf32>, vector<8x256xf32>, vector<8x256xf32>, vector<8x256xf32>, vector<8x256xf32>, vector<8x256xf32>, vector<8x256xf32>, vector<8x256xf32>, vector<8x256xf32>, vector<8x256xf32>, vector<8x256xf32>, vector<8x256xf32>, vector<8x256xf32>, vector<8x256xf32>, vector<8x256xf32> -> vector<128x256xf32>
    %129 = tpu.concatenate %95, %99, %103, %107, %111, %115, %119, %123, %127 in 0 : vector<8x256xf32>, vector<8x256xf32>, vector<8x256xf32>, vector<8x256xf32>, vector<8x256xf32>, vector<8x256xf32>, vector<8x256xf32>, vector<8x256xf32>, vector<8x256xf32> -> vector<72x256xf32>
    %130 = tpu.concatenate %128, %129 in 0 : vector<128x256xf32>, vector<72x256xf32> -> vector<200x256xf32>
    %131 = arith.truncf %130 : vector<200x256xf32> to vector<200x256xbf16>
    %c0_10 = arith.constant 0 : index
    %c0_11 = arith.constant 0 : index
    %132 = vector.load %arg3[%c0_10, %c0_11] : memref<8x200xbf16, #tpu.memory_space<vmem>>, vector<8x200xbf16>
    %cst_12 = arith.constant dense<0.000000e+00> : vector<8x256xf32>
    %133 = tpu.matmul %132, %131, %cst_12 {dimension_numbers = #tpu.dot_dimension_numbers<[1], [0], [0], [1], [0, 0, 1, 1], [], []>} : vector<8x200xbf16>, vector<200x256xbf16>, vector<8x256xf32> -> vector<8x256xf32>
    %134 = vector.broadcast %5 : vector<8x1xf32> to vector<8x256xf32>
    %135 = arith.addf %133, %134 : vector<8x256xf32>
    %c4_i32 = arith.constant 4 : i32
    %136 = tpu.dynamic_rotate %135 by %c4_i32 dim 0 : vector<8x256xf32>, i32 -> vector<8x256xf32>
    %137 = arith.mulf %135, %136 : vector<8x256xf32>
    %c0_13 = arith.constant 0 : index
    %c0_14 = arith.constant 0 : index
    %138 = vector.load %arg4[%c0_13, %c0_14] : memref<8x8xf32, #tpu.memory_space<vmem>>, vector<8x8xf32>
    %cst_15 = arith.constant dense<0.000000e+00> : vector<8x256xf32>
    %139 = tpu.matmul %138, %137, %cst_15 {dimension_numbers = #tpu.dot_dimension_numbers<[1], [0], [0], [1], [0, 0, 1, 1], [], []>} : vector<8x8xf32>, vector<8x256xf32>, vector<8x256xf32> -> vector<8x256xf32>
    %140 = vector.broadcast %6 : vector<8x1xf32> to vector<8x256xf32>
    %141 = arith.addf %139, %140 : vector<8x256xf32>
    %142 = arith.addf %141, %1 : vector<8x256xf32>
    %cst_16 = arith.constant dense<0.000000e+00> : vector<256xf32>
    %143 = vector.multi_reduction <add>, %142, %cst_16 [0] : vector<8x256xf32> to vector<256xf32>
    %144 = vector.shape_cast %143 : vector<256xf32> to vector<1x256xf32>
    %cst_17 = arith.constant 8.000000e+00 : f32
    %145 = vector.broadcast %cst_17 : f32 to vector<1x256xf32>
    %146 = arith.divf %144, %145 : vector<1x256xf32>
    %147 = vector.broadcast %146 : vector<1x256xf32> to vector<8x256xf32>
    %148 = arith.subf %142, %147 : vector<8x256xf32>
    %149 = arith.mulf %148, %148 : vector<8x256xf32>
    %cst_18 = arith.constant dense<0.000000e+00> : vector<256xf32>
    %150 = vector.multi_reduction <add>, %149, %cst_18 [0] : vector<8x256xf32> to vector<256xf32>
    %151 = vector.shape_cast %150 : vector<256xf32> to vector<1x256xf32>
    %cst_19 = arith.constant 8.000000e+00 : f32
    %152 = vector.broadcast %cst_19 : f32 to vector<1x256xf32>
    %153 = arith.divf %151, %152 : vector<1x256xf32>
    %cst_20 = arith.constant 9.99999997E-7 : f32
    %154 = vector.broadcast %cst_20 : f32 to vector<1x256xf32>
    %155 = arith.addf %153, %154 : vector<1x256xf32>
    %156 = math.rsqrt %155 : vector<1x256xf32>
    %157 = vector.broadcast %156 : vector<1x256xf32> to vector<8x256xf32>
    %158 = arith.mulf %148, %157 : vector<8x256xf32>
    %159 = vector.broadcast %7 : vector<8x1xf32> to vector<8x256xf32>
    %160 = arith.mulf %158, %159 : vector<8x256xf32>
    %161 = vector.broadcast %8 : vector<8x1xf32> to vector<8x256xf32>
    %162 = arith.addf %160, %161 : vector<8x256xf32>
    %c0_21 = arith.constant 0 : index
    %c0_22 = arith.constant 0 : index
    %163 = vector.load %arg5[%c0_21, %c0_22] : memref<9x8xf32, #tpu.memory_space<vmem>>, vector<9x8xf32>
    %164 = vector.extract_strided_slice %163 {offsets = [0, 0], sizes = [8, 4], strides = [1, 1]} : vector<9x8xf32> to vector<8x4xf32>
    %165 = vector.extract_strided_slice %163 {offsets = [0, 4], sizes = [8, 4], strides = [1, 1]} : vector<9x8xf32> to vector<8x4xf32>
    %166 = vector.extract_strided_slice %163 {offsets = [8, 0], sizes = [1, 4], strides = [1, 1]} : vector<9x8xf32> to vector<1x4xf32>
    %cst_23 = arith.constant dense<0.000000e+00> : vector<8xf32>
    %167 = vector.multi_reduction <add>, %162, %cst_23 [1] : vector<8x256xf32> to vector<8xf32>
    %168 = vector.shape_cast %167 : vector<8xf32> to vector<8x1xf32>
    %cst_24 = arith.constant 2.560000e+02 : f32
    %169 = vector.broadcast %cst_24 : f32 to vector<8x1xf32>
    %170 = arith.divf %168, %169 : vector<8x1xf32>
    %171 = vector.broadcast %170 : vector<8x1xf32> to vector<8x4xf32>
    %172 = arith.mulf %164, %171 : vector<8x4xf32>
    %cst_25 = arith.constant dense<0.000000e+00> : vector<4xf32>
    %173 = vector.multi_reduction <add>, %172, %cst_25 [0] : vector<8x4xf32> to vector<4xf32>
    %174 = vector.shape_cast %173 : vector<4xf32> to vector<1x4xf32>
    %175 = arith.addf %174, %166 : vector<1x4xf32>
    %cst_26 = arith.constant 0.000000e+00 : f32
    %176 = vector.broadcast %cst_26 : f32 to vector<1x4xf32>
    %177 = arith.cmpf oge, %175, %176 : vector<1x4xf32>
    %cst_27 = arith.constant 1.000000e-01 : f32
    %178 = vector.broadcast %cst_27 : f32 to vector<1x4xf32>
    %179 = arith.mulf %178, %175 : vector<1x4xf32>
    %180 = arith.select %177, %175, %179 : vector<1x4xi1>, vector<1x4xf32>
    %181 = vector.broadcast %180 : vector<1x4xf32> to vector<8x4xf32>
    %182 = arith.mulf %165, %181 : vector<8x4xf32>
    %cst_28 = arith.constant dense<0.000000e+00> : vector<8xf32>
    %183 = vector.multi_reduction <add>, %182, %cst_28 [1] : vector<8x4xf32> to vector<8xf32>
    %184 = vector.shape_cast %183 : vector<8xf32> to vector<8x1xf32>
    %185 = arith.addf %184, %9 : vector<8x1xf32>
    %186 = arith.negf %185 : vector<8x1xf32>
    %187 = math.exp %186 : vector<8x1xf32>
    %cst_29 = arith.constant 1.000000e+00 : f32
    %188 = vector.broadcast %cst_29 : f32 to vector<8x1xf32>
    %189 = arith.addf %188, %187 : vector<8x1xf32>
    %190 = arith.divf %188, %189 : vector<8x1xf32>
    %191 = vector.broadcast %190 : vector<8x1xf32> to vector<8x256xf32>
    %192 = arith.mulf %162, %191 : vector<8x256xf32>
    %c0_30 = arith.constant 0 : index
    %c0_31 = arith.constant 0 : index
    %193 = vector.load %arg6[%c0_30, %c0_31] : memref<64x8xbf16, #tpu.memory_space<vmem>>, vector<64x8xbf16>
    %194 = arith.truncf %192 : vector<8x256xf32> to vector<8x256xbf16>
    %cst_32 = arith.constant dense<0.000000e+00> : vector<64x256xf32>
    %195 = tpu.matmul %193, %194, %cst_32 {dimension_numbers = #tpu.dot_dimension_numbers<[1], [0], [0], [1], [0, 0, 1, 1], [], []>} : vector<64x8xbf16>, vector<8x256xbf16>, vector<64x256xf32> -> vector<64x256xf32>
    %c0_33 = arith.constant 0 : index
    %c0_34 = arith.constant 0 : index
    %196 = vector.load %arg7[%c0_33, %c0_34] : memref<64x1xf32, #tpu.memory_space<vmem>>, vector<64x1xf32>
    %197 = vector.broadcast %196 : vector<64x1xf32> to vector<64x256xf32>
    %198 = arith.addf %195, %197 : vector<64x256xf32>
    %199 = vector.extract_strided_slice %198 {offsets = [0, 0], sizes = [32, 256], strides = [1, 1]} : vector<64x256xf32> to vector<32x256xf32>
    %200 = vector.extract_strided_slice %198 {offsets = [32, 0], sizes = [32, 256], strides = [1, 1]} : vector<64x256xf32> to vector<32x256xf32>
    %201 = arith.mulf %199, %200 : vector<32x256xf32>
    %c0_35 = arith.constant 0 : index
    %c0_36 = arith.constant 0 : index
    %202 = vector.load %arg8[%c0_35, %c0_36] : memref<8x32xf32, #tpu.memory_space<vmem>>, vector<8x32xf32>
    %cst_37 = arith.constant dense<0.000000e+00> : vector<8x256xf32>
    %203 = tpu.matmul %202, %201, %cst_37 {dimension_numbers = #tpu.dot_dimension_numbers<[1], [0], [0], [1], [0, 0, 1, 1], [], []>} : vector<8x32xf32>, vector<32x256xf32>, vector<8x256xf32> -> vector<8x256xf32>
    %204 = vector.broadcast %10 : vector<8x1xf32> to vector<8x256xf32>
    %205 = arith.addf %203, %204 : vector<8x256xf32>
    %206 = arith.addf %205, %142 : vector<8x256xf32>
    %c0_38 = arith.constant 0 : index
    %c0_39 = arith.constant 0 : index
    %c0_40 = arith.constant 0 : index
    %207 = vector.load %arg10[%c0_38, %c0_39, %c0_40] : memref<1x8x256xf32, #tpu.memory_space<vmem>>, vector<1x8x256xf32>
    %208 = vector.shape_cast %207 : vector<1x8x256xf32> to vector<8x256xf32>
    %209 = vector.shape_cast %206 : vector<8x256xf32> to vector<1x8x256xf32>
    tpu.vector_store %arg10[%c0_38, %c0_39, %c0_40], %209 {strides = array<i32>} : memref<1x8x256xf32, #tpu.memory_space<vmem>>, vector<1x8x256xf32>,
    return
  }
  func.func @transform_0(%arg0: i32) -> (i32, i32, i32) {
    %c0_i32 = arith.constant 0 : i32
    %c0_i32_0 = arith.constant 0 : i32
    %c0_i32_1 = arith.constant 0 : i32
    return %arg0, %c0_i32, %c0_i32_0 : i32, i32, i32
  }
  func.func @transform_1(%arg0: i32) -> (i32, i32) {
    %c0_i32 = arith.constant 0 : i32
    %c0_i32_0 = arith.constant 0 : i32
    %c0_i32_1 = arith.constant 0 : i32
    return %c0_i32, %c0_i32_0 : i32, i32
  }
  func.func @transform_2(%arg0: i32) -> (i32, i32) {
    %c0_i32 = arith.constant 0 : i32
    %c0_i32_0 = arith.constant 0 : i32
    %c0_i32_1 = arith.constant 0 : i32
    return %c0_i32, %c0_i32_0 : i32, i32
  }
  func.func @transform_3(%arg0: i32) -> (i32, i32) {
    %c0_i32 = arith.constant 0 : i32
    %c0_i32_0 = arith.constant 0 : i32
    %c0_i32_1 = arith.constant 0 : i32
    return %c0_i32, %c0_i32_0 : i32, i32
  }
  func.func @transform_4(%arg0: i32) -> (i32, i32) {
    %c0_i32 = arith.constant 0 : i32
    %c0_i32_0 = arith.constant 0 : i32
    %c0_i32_1 = arith.constant 0 : i32
    return %c0_i32, %c0_i32_0 : i32, i32
  }
  func.func @transform_5(%arg0: i32) -> (i32, i32) {
    %c0_i32 = arith.constant 0 : i32
    %c0_i32_0 = arith.constant 0 : i32
    %c0_i32_1 = arith.constant 0 : i32
    return %c0_i32, %c0_i32_0 : i32, i32
  }
  func.func @transform_6(%arg0: i32) -> (i32, i32) {
    %c0_i32 = arith.constant 0 : i32
    %c0_i32_0 = arith.constant 0 : i32
    %c0_i32_1 = arith.constant 0 : i32
    return %c0_i32, %c0_i32_0 : i32, i32
  }
  func.func @transform_7(%arg0: i32) -> (i32, i32) {
    %c0_i32 = arith.constant 0 : i32
    %c0_i32_0 = arith.constant 0 : i32
    %c0_i32_1 = arith.constant 0 : i32
    return %c0_i32, %c0_i32_0 : i32, i32
  }
  func.func @transform_8(%arg0: i32) -> (i32, i32) {
    %c0_i32 = arith.constant 0 : i32
    %c0_i32_0 = arith.constant 0 : i32
    %c0_i32_1 = arith.constant 0 : i32
    return %c0_i32, %c0_i32_0 : i32, i32
  }
  func.func @transform_9(%arg0: i32) -> (i32, i32, i32) {
    %c0_i32 = arith.constant 0 : i32
    %c0_i32_0 = arith.constant 0 : i32
    %c0_i32_1 = arith.constant 0 : i32
    return %arg0, %c0_i32, %c0_i32_0 : i32, i32, i32
  }
}

</mosaic_0001>

<llo_original>
// kernel: tpu_custom_call.1
$region0: #{tpu_custom_call.1}
  #allocation0 [shape = 'u32[]', space=smem, size = 0x4, offset = 0x4, fixed_abs, tag = 'smem constant byte address 0x4 - core index']
  #allocation1 [shape = 'u32[72,128]{1,0:T(1,128)}', space=vmem, size = 0x9000, scoped, tag = 'internal scratch']
  %s0 = inlined_call_operand.vmem [shape: f32[2,8,256], index: 0, kind: input, shape index: {}]
  %s1 = inlined_call_operand.vmem [shape: f32[8,8], index: 1, kind: input, shape index: {}]
  %s2 = inlined_call_operand.vmem [shape: bf16[8,200], index: 2, kind: input, shape index: {}]
  %s3 = inlined_call_operand.vmem [shape: f32[8,8], index: 3, kind: input, shape index: {}]
  %s4 = inlined_call_operand.vmem [shape: f32[9,8], index: 4, kind: input, shape index: {}]
  %s5 = inlined_call_operand.vmem [shape: bf16[64,8], index: 5, kind: input, shape index: {}]
  %s6 = inlined_call_operand.vmem [shape: f32[64,1], index: 6, kind: input, shape index: {}]
  %s7 = inlined_call_operand.hbm [shape: f32[8,32], index: 7, kind: input, shape index: {}]
  %s8 = inlined_call_operand.vmem [shape: f32[25,256], index: 8, kind: input, shape index: {}]
  %s9 = inlined_call_operand.hbm [shape: f32[2,8,256], index: 9, kind: output, shape index: {}]
  %s10 = sld [smem:[#allocation0]]
  $region73: #{tpu_custom_call.1} parent=0
    _
  %s12 = ssub.s32 1, %s10
  %s13 = scalar_select 0, %s12, %s10
  $region1: #{tpu_custom_call.1} parent=0
    #allocation2 [shape = 'u8[4096]{0}', space=vmem, size = 0x1000, scoped, tag = 'input window, operand 7, single buffered']
    #allocation3 [shape = 's32[2]{0}', space=sflag, size = 0x8, scoped, tag = 'scoped memory for tpu_custom_call.1']
    #allocation4 [shape = 's32[2]{0}', space=sflag, size = 0x8, scoped, tag = 'scoped memory for tpu_custom_call.1']
    #allocation5 [shape = 'u8[16384]{0}', space=vmem, size = 0x4000, scoped, tag = 'output window, operand 0']
    %14 = vsyncpa [#allocation3], 0
    %15 = vsyncpa [#allocation4], 0
    %s16 = scalar_lea.sflag [#allocation4], 1
    %17 = vsyncpa %s16, 0
    loop: start=0, step=1, limit=4
    $region2: #{tpu_custom_call.1} parent=1 // loop_pre_header
      _
    $region3: #{tpu_custom_call.1} parent=1 // loop_header
      %s19 = sphi 0, %s23
      %p20 = scmp.ge.s32.totalorder %s19, 4
      %s29 = sphi 0, %s31
      %s32 = sphi 0, %s29
      %s33 = sphi 0, %s32
      %s49 = sphi 0, %s33
      %s53 = sphi 0, %s53
      %s55 = sphi 0, %s53
      %s56 = sphi 0, %s55
      %s70 = sphi 0, %s56
      %s74 = sphi 0, %s74
      %s76 = sphi 0, %s74
      %s77 = sphi 0, %s76
      %s91 = sphi 0, %s77
      %s95 = sphi 0, %s95
      %s97 = sphi 0, %s95
      %s98 = sphi 0, %s97
      %s112 = sphi 0, %s98
      %s116 = sphi 0, %s116
      %s118 = sphi 0, %s116
      %s119 = sphi 0, %s118
      %s133 = sphi 0, %s119
      %s137 = sphi 0, %s137
      %s139 = sphi 0, %s137
      %s140 = sphi 0, %s139
      %s154 = sphi 0, %s140
      %s158 = sphi 0, %s158
      %s160 = sphi 0, %s158
      %s161 = sphi 0, %s160
      %s175 = sphi 0, %s161
      %s179 = sphi 0, %s179
      %s181 = sphi 0, %s179
      %s182 = sphi 0, %s181
      %s196 = sphi 0, %s182
      %s200 = sphi 0, %s200
      %s202 = sphi 0, %s200
      %s203 = sphi 0, %s202
      %s217 = sphi 0, %s203
      %s223 = sphi 0, %s225
      %s226 = sphi 0, %s223
      %s227 = sphi 0, %s226
      %s243 = sphi 0, %s227
    $region4: #{tpu_custom_call.1} parent=1 // loop_header_branch
      %22 = sbr.rel (%p20) target = $region8
    $region5: #{tpu_custom_call.1} parent=1 // loop_body
      %s24 = ssub.s32 %s19, 1
      %s25 = ssub.s32 %s19, 2
      %s26 = sadd.s32 %s19, 1
      %s27 = ssub.s32 %s19, %s26
      %p28 = scmp.eq.s32.totalorder %s27, 0
      %s30 = sadd.s32 %s29, 1
      %s31 = scalar_select %p28, %s29, %s30
      %p34 = pneg %p28
      %p35 = scmp.eq.s32.totalorder %s19, 1
      %p36 = por %p34, %p35
      %p37 = scmp.ne.s32.totalorder %s29, %s32
      %p38 = scmp.eq.s32.totalorder %s19, 0
      %p39 = por %p37, %p38
      %p40 = scmp.ne.s32.totalorder %s29, %s32
      %p41 = scmp.eq.s32.totalorder %s24, 1
      %p42 = por %p40, %p41
      %p43 = scmp.ne.s32.totalorder %s32, %s33
      %p44 = scmp.eq.s32.totalorder %s24, 0
      %p45 = por %p43, %p44
      %p46 = scmp.ne.s32.totalorder %s32, %s33
      %p47 = scmp.eq.s32.totalorder %s25, 1
      %p48 = por %p46, %p47
      %p50 = scmp.ne.s32.totalorder %s33, %s49
      %p51 = scmp.eq.s32.totalorder %s25, 0
      %p52 = por %p50, %p51
      %s54 = sadd.s32 %s53, 1
      %p57 = scmp.eq.s32.totalorder %s19, 1
      %p58 = scmp.ne.s32.totalorder %s53, %s55
      %p59 = scmp.eq.s32.totalorder %s19, 0
      %p60 = por %p58, %p59
      %p61 = scmp.ne.s32.totalorder %s53, %s55
      %p62 = scmp.eq.s32.totalorder %s24, 1
      %p63 = por %p61, %p62
      %p64 = scmp.ne.s32.totalorder %s55, %s56
      %p65 = scmp.eq.s32.totalorder %s24, 0
      %p66 = por %p64, %p65
      %p67 = scmp.ne.s32.totalorder %s55, %s56
      %p68 = scmp.eq.s32.totalorder %s25, 1
      %p69 = por %p67, %p68
      %p71 = scmp.ne.s32.totalorder %s56, %s70
      %p72 = scmp.eq.s32.totalorder %s25, 0
      %p73 = por %p71, %p72
      %s75 = sadd.s32 %s74, 1
      %p78 = scmp.eq.s32.totalorder %s19, 1
      %p79 = scmp.ne.s32.totalorder %s74, %s76
      %p80 = scmp.eq.s32.totalorder %s19, 0
      %p81 = por %p79, %p80
      %p82 = scmp.ne.s32.totalorder %s74, %s76
      %p83 = scmp.eq.s32.totalorder %s24, 1
      %p84 = por %p82, %p83
      %p85 = scmp.ne.s32.totalorder %s76, %s77
      %p86 = scmp.eq.s32.totalorder %s24, 0
      %p87 = por %p85, %p86
      %p88 = scmp.ne.s32.totalorder %s76, %s77
      %p89 = scmp.eq.s32.totalorder %s25, 1
      %p90 = por %p88, %p89
      %p92 = scmp.ne.s32.totalorder %s77, %s91
      %p93 = scmp.eq.s32.totalorder %s25, 0
      %p94 = por %p92, %p93
      %s96 = sadd.s32 %s95, 1
      %p99 = scmp.eq.s32.totalorder %s19, 1
      %p100 = scmp.ne.s32.totalorder %s95, %s97
      %p101 = scmp.eq.s32.totalorder %s19, 0
      %p102 = por %p100, %p101
      %p103 = scmp.ne.s32.totalorder %s95, %s97
      %p104 = scmp.eq.s32.totalorder %s24, 1
      %p105 = por %p103, %p104
      %p106 = scmp.ne.s32.totalorder %s97, %s98
      %p107 = scmp.eq.s32.totalorder %s24, 0
      %p108 = por %p106, %p107
      %p109 = scmp.ne.s32.totalorder %s97, %s98
      %p110 = scmp.eq.s32.totalorder %s25, 1
      %p111 = por %p109, %p110
      %p113 = scmp.ne.s32.totalorder %s98, %s112
      %p114 = scmp.eq.s32.totalorder %s25, 0
      %p115 = por %p113, %p114
      %s117 = sadd.s32 %s116, 1
      %p120 = scmp.eq.s32.totalorder %s19, 1
      %p121 = scmp.ne.s32.totalorder %s116, %s118
      %p122 = scmp.eq.s32.totalorder %s19, 0
      %p123 = por %p121, %p122
      %p124 = scmp.ne.s32.totalorder %s116, %s118
      %p125 = scmp.eq.s32.totalorder %s24, 1
      %p126 = por %p124, %p125
      %p127 = scmp.ne.s32.totalorder %s118, %s119
      %p128 = scmp.eq.s32.totalorder %s24, 0
      %p129 = por %p127, %p128
      %p130 = scmp.ne.s32.totalorder %s118, %s119
      %p131 = scmp.eq.s32.totalorder %s25, 1
      %p132 = por %p130, %p131
      %p134 = scmp.ne.s32.totalorder %s119, %s133
      %p135 = scmp.eq.s32.totalorder %s25, 0
      %p136 = por %p134, %p135
      %s138 = sadd.s32 %s137, 1
      %p141 = scmp.eq.s32.totalorder %s19, 1
      %p142 = scmp.ne.s32.totalorder %s137, %s139
      %p143 = scmp.eq.s32.totalorder %s19, 0
      %p144 = por %p142, %p143
      %p145 = scmp.ne.s32.totalorder %s137, %s139
      %p146 = scmp.eq.s32.totalorder %s24, 1
      %p147 = por %p145, %p146
      %p148 = scmp.ne.s32.totalorder %s139, %s140
      %p149 = scmp.eq.s32.totalorder %s24, 0
      %p150 = por %p148, %p149
      %p151 = scmp.ne.s32.totalorder %s139, %s140
      %p152 = scmp.eq.s32.totalorder %s25, 1
      %p153 = por %p151, %p152
      %p155 = scmp.ne.s32.totalorder %s140, %s154
      %p156 = scmp.eq.s32.totalorder %s25, 0
      %p157 = por %p155, %p156
      %s159 = sadd.s32 %s158, 1
      %p162 = scmp.eq.s32.totalorder %s19, 1
      %p163 = scmp.ne.s32.totalorder %s158, %s160
      %p164 = scmp.eq.s32.totalorder %s19, 0
      %p165 = por %p163, %p164
      %p166 = scmp.ne.s32.totalorder %s158, %s160
      %p167 = scmp.eq.s32.totalorder %s24, 1
      %p168 = por %p166, %p167
      %p169 = scmp.ne.s32.totalorder %s160, %s161
      %p170 = scmp.eq.s32.totalorder %s24, 0
      %p171 = por %p169, %p170
      %p172 = scmp.ne.s32.totalorder %s160, %s161
      %p173 = scmp.eq.s32.totalorder %s25, 1
      %p174 = por %p172, %p173
      %p176 = scmp.ne.s32.totalorder %s161, %s175
      %p177 = scmp.eq.s32.totalorder %s25, 0
      %p178 = por %p176, %p177
      %s180 = sadd.s32 %s179, 1
      %p183 = scmp.eq.s32.totalorder %s19, 1
      %p184 = scmp.ne.s32.totalorder %s179, %s181
      %p185 = scmp.eq.s32.totalorder %s19, 0
      %p186 = por %p184, %p185
      %p187 = scmp.ne.s32.totalorder %s179, %s181
      %p188 = scmp.eq.s32.totalorder %s24, 1
      %p189 = por %p187, %p188
      %p190 = scmp.ne.s32.totalorder %s181, %s182
      %p191 = scmp.eq.s32.totalorder %s24, 0
      %p192 = por %p190, %p191
      %p193 = scmp.ne.s32.totalorder %s181, %s182
      %p194 = scmp.eq.s32.totalorder %s25, 1
      %p195 = por %p193, %p194
      %p197 = scmp.ne.s32.totalorder %s182, %s196
      %p198 = scmp.eq.s32.totalorder %s25, 0
      %p199 = por %p197, %p198
      %s201 = sadd.s32 %s200, 1
      %p204 = scmp.eq.s32.totalorder %s19, 1
      %p205 = scmp.ne.s32.totalorder %s200, %s202
      %p206 = scmp.eq.s32.totalorder %s19, 0
      %p207 = por %p205, %p206
      %p208 = scmp.ne.s32.totalorder %s200, %s202
      %p209 = scmp.eq.s32.totalorder %s24, 1
      %p210 = por %p208, %p209
      %p211 = scmp.ne.s32.totalorder %s202, %s203
      %p212 = scmp.eq.s32.totalorder %s24, 0
      %p213 = por %p211, %p212
      %p214 = scmp.ne.s32.totalorder %s202, %s203
      %p215 = scmp.eq.s32.totalorder %s25, 1
      %p216 = por %p214, %p215
      %p218 = scmp.ne.s32.totalorder %s203, %s217
      %p219 = scmp.eq.s32.totalorder %s25, 0
      %p220 = por %p218, %p219
      %s221 = ssub.s32 %s19, %s26
      %p222 = scmp.eq.s32.totalorder %s221, 0
      %s224 = sadd.s32 %s223, 1
      %s225 = scalar_select %p222, %s223, %s224
      %p228 = pneg %p222
      %p229 = scmp.eq.s32.totalorder %s19, 1
      %p230 = por %p228, %p229
      %p231 = scmp.ne.s32.totalorder %s223, %s226
      %p232 = scmp.eq.s32.totalorder %s19, 0
      %p233 = por %p231, %p232
      %p234 = scmp.ne.s32.totalorder %s223, %s226
      %p235 = scmp.eq.s32.totalorder %s24, 1
      %p236 = por %p234, %p235
      %p237 = scmp.ne.s32.totalorder %s226, %s227
      %p238 = scmp.eq.s32.totalorder %s24, 0
      %p239 = por %p237, %p238
      %p240 = scmp.ne.s32.totalorder %s226, %s227
      %p241 = scmp.eq.s32.totalorder %s25, 1
      %p242 = por %p240, %p241
      %p244 = scmp.ne.s32.totalorder %s227, %s243
      %p245 = scmp.eq.s32.totalorder %s25, 0
      %p246 = por %p244, %p245
      %p247 = scmp.le.s32.totalorder 1, %s19
      %p248 = scmp.lt.s32.totalorder %s19, 3
      %p249 = pnand %p247, %p248
      %p250 = pneg %p249
      // Predicated region
      $region9: #{tpu_custom_call.1} parent=5 // pred_check
        _
      $region10: #{tpu_custom_call.1} parent=5 // pred_check_branch
        %252 = sbr.rel (%p249) target = $region12
      $region11: #{tpu_custom_call.1} parent=5 // pred_region
        %s253 = ssub.s32 %s19, 1
        // Predicated region
        $region13: #{tpu_custom_call.1} parent=11 // pred_check
          %p254 = pneg %p66
        $region14: #{tpu_custom_call.1} parent=11 // pred_check_branch
          %256 = sbr.rel (%p254) target = $region16
        $region15: #{tpu_custom_call.1} parent=11 // pred_region
          _
        $region16: #{tpu_custom_call.1} parent=11 // pred_fallthru
          _
        // Predicated region
        $region17: #{tpu_custom_call.1} parent=11 // pred_check
          %p257 = pneg %p87
        $region18: #{tpu_custom_call.1} parent=11 // pred_check_branch
          %259 = sbr.rel (%p257) target = $region20
        $region19: #{tpu_custom_call.1} parent=11 // pred_region
          _
        $region20: #{tpu_custom_call.1} parent=11 // pred_fallthru
          _
        // Predicated region
        $region21: #{tpu_custom_call.1} parent=11 // pred_check
          %p260 = pneg %p108
        $region22: #{tpu_custom_call.1} parent=11 // pred_check_branch
          %262 = sbr.rel (%p260) target = $region24
        $region23: #{tpu_custom_call.1} parent=11 // pred_region
          _
        $region24: #{tpu_custom_call.1} parent=11 // pred_fallthru
          _
        // Predicated region
        $region25: #{tpu_custom_call.1} parent=11 // pred_check
          %p263 = pneg %p129
        $region26: #{tpu_custom_call.1} parent=11 // pred_check_branch
          %265 = sbr.rel (%p263) target = $region28
        $region27: #{tpu_custom_call.1} parent=11 // pred_region
          _
        $region28: #{tpu_custom_call.1} parent=11 // pred_fallthru
          _
        // Predicated region
        $region29: #{tpu_custom_call.1} parent=11 // pred_check
          %p266 = pneg %p150
        $region30: #{tpu_custom_call.1} parent=11 // pred_check_branch
          %268 = sbr.rel (%p266) target = $region32
        $region31: #{tpu_custom_call.1} parent=11 // pred_region
          _
        $region32: #{tpu_custom_call.1} parent=11 // pred_fallthru
          _
        // Predicated region
        $region33: #{tpu_custom_call.1} parent=11 // pred_check
          %p269 = pneg %p171
        $region34: #{tpu_custom_call.1} parent=11 // pred_check_branch
          %271 = sbr.rel (%p269) target = $region36
        $region35: #{tpu_custom_call.1} parent=11 // pred_region
          _
        $region36: #{tpu_custom_call.1} parent=11 // pred_fallthru
          _
        // Predicated region
        $region37: #{tpu_custom_call.1} parent=11 // pred_check
          %p272 = pneg %p192
        $region38: #{tpu_custom_call.1} parent=11 // pred_check_branch
          %274 = sbr.rel (%p272) target = $region40
        $region39: #{tpu_custom_call.1} parent=11 // pred_region
          %276 = vsyncadd [#allocation3], 0
          %s278 = sshll.u32 %s7, 4
          %s279 = int_to_ptr.hbm [resolvable:$true] %s278
          %s280 = sshll.u32 [#allocation2], 4
          %s281 = int_to_ptr.vmem [resolvable:$true] %s280
          %283 = dma.hbm_to_vmem [thread:$0]  %s279, 128, %s281, [#allocation3]
        $region40: #{tpu_custom_call.1} parent=11 // pred_fallthru
          _
        // Predicated region
        $region41: #{tpu_custom_call.1} parent=11 // pred_check
          %p284 = pneg %p213
        $region42: #{tpu_custom_call.1} parent=11 // pred_check_branch
          %286 = sbr.rel (%p284) target = $region44
        $region43: #{tpu_custom_call.1} parent=11 // pred_region
          _
        $region44: #{tpu_custom_call.1} parent=11 // pred_fallthru
          _
      $region12: #{tpu_custom_call.1} parent=5 // pred_fallthru
        _
      %p287 = scmp.lt.s32.totalorder %s19, 2
      // Predicated region
      $region45: #{tpu_custom_call.1} parent=5 // pred_check
        %p288 = pneg %p287
      $region46: #{tpu_custom_call.1} parent=5 // pred_check_branch
        %290 = sbr.rel (%p288) target = $region48
      $region47: #{tpu_custom_call.1} parent=5 // pred_region
        // Predicated region
        $region49: #{tpu_custom_call.1} parent=47 // pred_check
          %p291 = pneg %p39
        $region50: #{tpu_custom_call.1} parent=47 // pred_check_branch
          %293 = sbr.rel (%p291) target = $region52
        $region51: #{tpu_custom_call.1} parent=47 // pred_region
          %p294 = scmp.lt.s32.totalorder %s19, 1
          %s295 = scalar_select %p294, %s19, 1
          %s296 = smul.addr %s295, 2
          %s297 = smul.addr %s296, 8
          %s298 = scalar_lea.vmem %s0, %s297
        $region52: #{tpu_custom_call.1} parent=47 // pred_fallthru
          _
      $region48: #{tpu_custom_call.1} parent=5 // pred_fallthru
        _
      %p299 = scmp.le.s32.totalorder 1, %s19
      %p300 = scmp.lt.s32.totalorder %s19, 3
      %p301 = pnand %p299, %p300
      %p302 = pneg %p301
      // Predicated region
      $region53: #{tpu_custom_call.1} parent=5 // pred_check
        _
      $region54: #{tpu_custom_call.1} parent=5 // pred_check_branch
        %304 = sbr.rel (%p301) target = $region56
      $region55: #{tpu_custom_call.1} parent=5 // pred_region
        %s305 = ssub.s32 %s19, 1
        // Predicated region
        $region57: #{tpu_custom_call.1} parent=55 // pred_check
          %p306 = pneg %p192
        $region58: #{tpu_custom_call.1} parent=55 // pred_check_branch
          %308 = sbr.rel (%p306) target = $region60
        $region59: #{tpu_custom_call.1} parent=55 // pred_region
          %310 = dma.done [#allocation3], 128
        $region60: #{tpu_custom_call.1} parent=55 // pred_fallthru
          _
        %p311 = scmp.lt.s32.totalorder %s24, 1
        %s312 = scalar_select %p311, %s24, 1
        %s313 = smul.addr %s312, 2
        %s314 = smul.addr %s313, 8
        %s315 = scalar_lea.vmem %s0, %s314
        %p316 = pneg %p45
        %p317 = pneg %p42
        %p318 = pneg %p66
        %p319 = pneg %p63
        %p320 = pneg %p87
        %p321 = pneg %p84
        %p322 = pneg %p108
        %p323 = pneg %p105
        %p324 = pneg %p129
        %p325 = pneg %p126
        %p326 = pneg %p150
        %p327 = pneg %p147
        %p328 = pneg %p171
        %p329 = pneg %p168
        %p330 = pneg %p192
        %p331 = pneg %p189
        %p332 = pneg %p213
        %p333 = pneg %p210
        %p334 = pneg %p239
        %p335 = pneg %p236
        %s336 = sand.u32 %s226, 1
        %s337 = scalar_lea.sflag [#allocation4], %s336
        %s338 = sand.u32 %s226, 1
        %s339 = smul.addr %s338, 16
        %s340 = scalar_lea.vmem [#allocation5], %s339
        %p341 = scmp.lt.s32.totalorder %s24, 1
        %s342 = scalar_select %p341, %s24, 1
        %s343 = smul.addr %s342, 2
        %s344 = smul.addr %s343, 8
        %s345 = scalar_lea.vmem %s0, %s344
        %v347 = vld [vmem:[%s345] sm:$0xff]
        %v348 = vld [vmem:[%s345 + $0x8] sm:$0xff]
        %v349 = vld [vmem:[%s1] sm:$0xff]
        %v350 = vrot.slane %v347, 4
        %v351 = vadd.f32 %v347, %v350
        %v352 = vrot.slane %v351, 2
        %v353 = vadd.f32 %v351, %v352
        %v354 = vrot.slane %v353, 1
        %v355 = vadd.f32 %v353, %v354
        %v356 = vrot.slane %v348, 4
        %v357 = vadd.f32 %v348, %v356
        %v358 = vrot.slane %v357, 2
        %v359 = vadd.f32 %v357, %v358
        %v360 = vrot.slane %v359, 1
        %v361 = vadd.f32 %v359, %v360
        %v362 = vrcp.pop 8.0
        %v363 = vmul.f32 8.0, %v362
        %v364 = vsub.f32 1.0, %v363
        %v365 = vmul.f32 %v362, %v364
        %v366 = vadd.f32 %v362, %v365
        %vm367 = vweird.f32 %v362
        %v368 = vsel %vm367, %v362, %v366
        %v369 = vmul.f32 %v355, %v368
        %v370 = vmul.f32 %v361, %v368
        %v371 = vsub.f32 %v347, %v369
        %v372 = vsub.f32 %v348, %v370
        %v373 = vmul.f32 %v371, %v371
        %v374 = vmul.f32 %v372, %v372
        %v375 = vrot.slane %v373, 4
        %v376 = vadd.f32 %v373, %v375
        %v377 = vrot.slane %v376, 2
        %v378 = vadd.f32 %v376, %v377
        %v379 = vrot.slane %v378, 1
        %v380 = vadd.f32 %v378, %v379
        %v381 = vrot.slane %v374, 4
        %v382 = vadd.f32 %v374, %v381
        %v383 = vrot.slane %v382, 2
        %v384 = vadd.f32 %v382, %v383
        %v385 = vrot.slane %v384, 1
        %v386 = vadd.f32 %v384, %v385
        %v387 = vmul.f32 %v380, %v368
        %v388 = vmul.f32 %v386, %v368
        %v389 = vadd.f32 %v387, 1e-06
        %v390 = vadd.f32 %v388, 1e-06
        %v391 = vrsqrt.pop %v389
        %v392 = vmul.f32 %v391, %v389
        %v393 = vmul.f32 %v392, %v391
        %v394 = vmul.f32 0.5, %v393
        %v395 = vsub.f32 1.5, %v394
        %v396 = vmul.f32 %v391, %v395
        %vm397 = vweird.f32 %v389
        %vm398 = vweird.f32 %v391
        %vm399 = vmor %vm397, %vm398
        %v400 = vsel %vm399, %v391, %v396
        %v401 = vrsqrt.pop %v390
        %v402 = vmul.f32 %v401, %v390
        %v403 = vmul.f32 %v402, %v401
        %v404 = vmul.f32 0.5, %v403
        %v405 = vsub.f32 1.5, %v404
        %v406 = vmul.f32 %v401, %v405
        %vm407 = vweird.f32 %v390
        %vm408 = vweird.f32 %v401
        %vm409 = vmor %vm407, %vm408
        %v410 = vsel %vm409, %v401, %v406
        %v411 = vmul.f32 %v371, %v400
        %v412 = vmul.f32 %v372, %v410
        %414 = vset.pattern.permute.xlu0 0
        %415 = vperm.xlu0 %414, %v349
        %v416 = vpop.permute.xlu0 %415
        %v418 = vmul.f32 %v411, %v416
        %v419 = vmul.f32 %v412, %v416
        %420 = vset.pattern.permute.xlu0 1
        %421 = vperm.xlu0 %420, %v349
        %v422 = vpop.permute.xlu0 %421
        %v424 = vadd.f32 %v418, %v422
        %v425 = vadd.f32 %v419, %v422
        %v426 = vld [vmem:[%s8] sm:$0xff]
        %v427 = vld [vmem:[%s8 + $0x8] sm:$0xff]
        %v428 = vld [vmem:[%s8 + $0x10] sm:$0xff]
        %v429 = vld [vmem:[%s8 + $0x18] sm:$0xff]
        %v430 = vld [vmem:[%s8 + $0x20] sm:$0xff]
        %v431 = vld [vmem:[%s8 + $0x28] sm:$0xff]
        %v432 = vld [vmem:[%s8 + $0x30] sm:$0x1]
        %v433 = vld [vmem:[%s8 + $0x38] sm:$0x1]
        %434 = vrot.lane.b32.xlu0 %v424, 34
        %v435 = vpop.permute.xlu0 %434
        %436 = vrot.lane.b32.xlu0 %v425, 34
        %v437 = vpop.permute.xlu0 %436
        %v438 = vlaneseq
        %v439 = vand.u32 %v438, 127
        %vm440 = vcmp.lt.s32.totalorder %v439, 34
        %v441 = vsel %vm440, %v435, %v437
        %v442 = vsel %vm440, %v437, %v435
        %v443 = vperm.slane %v426, 0
        %v444 = vperm.slane %v427, 0
        %v445 = vmul.f32 %v442, %v443
        %v446 = vmul.f32 %v441, %v444
        %447 = vrot.lane.b32.xlu0 %v424, 33
        %v448 = vpop.permute.xlu0 %447
        %449 = vrot.lane.b32.xlu0 %v425, 33
        %v450 = vpop.permute.xlu0 %449
        %vm451 = vcmp.lt.s32.totalorder %v439, 33
        %v452 = vsel %vm451, %v448, %v450
        %v453 = vsel %vm451, %v450, %v448
        %v454 = vperm.slane %v426, 1
        %v455 = vperm.slane %v427, 1
        %v456 = vmul.f32 %v453, %v454
        %v457 = vmul.f32 %v452, %v455
        %458 = vrot.lane.b32.xlu0 %v424, 32
        %v459 = vpop.permute.xlu0 %458
        %460 = vrot.lane.b32.xlu0 %v425, 32
        %v461 = vpop.permute.xlu0 %460
        %vm462 = vcmp.lt.s32.totalorder %v439, 32
        %v463 = vsel %vm462, %v459, %v461
        %v464 = vsel %vm462, %v461, %v459
        %v465 = vperm.slane %v426, 2
        %v466 = vperm.slane %v427, 2
        %v467 = vmul.f32 %v464, %v465
        %v468 = vmul.f32 %v463, %v466
        %469 = vrot.lane.b32.xlu0 %v424, 31
        %v470 = vpop.permute.xlu0 %469
        %471 = vrot.lane.b32.xlu0 %v425, 31
        %v472 = vpop.permute.xlu0 %471
        %vm473 = vcmp.lt.s32.totalorder %v439, 31
        %v474 = vsel %vm473, %v470, %v472
        %v475 = vsel %vm473, %v472, %v470
        %v476 = vperm.slane %v426, 3
        %v477 = vperm.slane %v427, 3
        %v478 = vmul.f32 %v475, %v476
        %v479 = vmul.f32 %v474, %v477
        %480 = vrot.lane.b32.xlu0 %v424, 30
        %v481 = vpop.permute.xlu0 %480
        %482 = vrot.lane.b32.xlu0 %v425, 30
        %v483 = vpop.permute.xlu0 %482
        %vm484 = vcmp.lt.s32.totalorder %v439, 30
        %v485 = vsel %vm484, %v481, %v483
        %v486 = vsel %vm484, %v483, %v481
        %v487 = vperm.slane %v426, 4
        %v488 = vperm.slane %v427, 4
        %v489 = vmul.f32 %v486, %v487
        %v490 = vmul.f32 %v485, %v488
        %491 = vrot.lane.b32.xlu0 %v424, 18
        %v492 = vpop.permute.xlu0 %491
        %493 = vrot.lane.b32.xlu0 %v425, 18
        %v494 = vpop.permute.xlu0 %493
        %vm495 = vcmp.lt.s32.totalorder %v439, 18
        %v496 = vsel %vm495, %v492, %v494
        %v497 = vsel %vm495, %v494, %v492
        %v498 = vperm.slane %v426, 5
        %v499 = vperm.slane %v427, 5
        %v500 = vmul.f32 %v497, %v498
        %v501 = vmul.f32 %v496, %v499
        %502 = vrot.lane.b32.xlu0 %v424, 17
        %v503 = vpop.permute.xlu0 %502
        %504 = vrot.lane.b32.xlu0 %v425, 17
        %v505 = vpop.permute.xlu0 %504
        %vm506 = vcmp.lt.s32.totalorder %v439, 17
        %v507 = vsel %vm506, %v503, %v505
        %v508 = vsel %vm506, %v505, %v503
        %v509 = vperm.slane %v426, 6
        %v510 = vperm.slane %v427, 6
        %v511 = vmul.f32 %v508, %v509
        %v512 = vmul.f32 %v507, %v510
        %513 = vrot.lane.b32.xlu0 %v424, 16
        %v514 = vpop.permute.xlu0 %513
        %515 = vrot.lane.b32.xlu0 %v425, 16
        %v516 = vpop.permute.xlu0 %515
        %vm517 = vcmp.lt.s32.totalorder %v439, 16
        %v518 = vsel %vm517, %v514, %v516
        %v519 = vsel %vm517, %v516, %v514
        %v520 = vperm.slane %v426, 7
        %v521 = vperm.slane %v427, 7
        %v522 = vmul.f32 %v519, %v520
        %v523 = vmul.f32 %v518, %v521
        %524 = vrot.lane.b32.xlu0 %v424, 15
        %v525 = vpop.permute.xlu0 %524
        %526 = vrot.lane.b32.xlu0 %v425, 15
        %v527 = vpop.permute.xlu0 %526
        %vm528 = vcmp.lt.s32.totalorder %v439, 15
        %v529 = vsel %vm528, %v525, %v527
        %v530 = vsel %vm528, %v527, %v525
        %v531 = vperm.slane %v428, 0
        %v532 = vperm.slane %v429, 0
        %v533 = vmul.f32 %v530, %v531
        %v534 = vmul.f32 %v529, %v532
        %535 = vrot.lane.b32.xlu0 %v424, 14
        %v536 = vpop.permute.xlu0 %535
        %537 = vrot.lane.b32.xlu0 %v425, 14
        %v538 = vpop.permute.xlu0 %537
        %vm539 = vcmp.lt.s32.totalorder %v439, 14
        %v540 = vsel %vm539, %v536, %v538
        %v541 = vsel %vm539, %v538, %v536
        %v542 = vperm.slane %v428, 1
        %v543 = vperm.slane %v429, 1
        %v544 = vmul.f32 %v541, %v542
        %v545 = vmul.f32 %v540, %v543
        %546 = vrot.lane.b32.xlu0 %v424, 2
        %v547 = vpop.permute.xlu0 %546
        %548 = vrot.lane.b32.xlu0 %v425, 2
        %v549 = vpop.permute.xlu0 %548
        %vm550 = vcmp.lt.s32.totalorder %v439, 2
        %v551 = vsel %vm550, %v547, %v549
        %v552 = vsel %vm550, %v549, %v547
        %v553 = vperm.slane %v428, 2
        %v554 = vperm.slane %v429, 2
        %v555 = vmul.f32 %v552, %v553
        %v556 = vmul.f32 %v551, %v554
        %557 = vrot.lane.b32.xlu0 %v424, 1
        %v558 = vpop.permute.xlu0 %557
        %559 = vrot.lane.b32.xlu0 %v425, 1
        %v560 = vpop.permute.xlu0 %559
        %vm561 = vcmp.lt.s32.totalorder %v439, 1
        %v562 = vsel %vm561, %v558, %v560
        %v563 = vsel %vm561, %v560, %v558
        %v564 = vperm.slane %v428, 3
        %v565 = vperm.slane %v429, 3
        %v566 = vmul.f32 %v563, %v564
        %v567 = vmul.f32 %v562, %v565
        %568 = vrot.lane.b32.xlu0 %v424, 127
        %v569 = vpop.permute.xlu0 %568
        %570 = vrot.lane.b32.xlu0 %v425, 127
        %v571 = vpop.permute.xlu0 %570
        %vm572 = vcmp.lt.s32.totalorder %v439, 127
        %v573 = vsel %vm572, %v569, %v571
        %v574 = vsel %vm572, %v571, %v569
        %v575 = vperm.slane %v428, 5
        %v576 = vperm.slane %v429, 5
        %v577 = vmul.f32 %v573, %v575
        %v578 = vmul.f32 %v574, %v576
        %579 = vrot.lane.b32.xlu0 %v424, 126
        %v580 = vpop.permute.xlu0 %579
        %581 = vrot.lane.b32.xlu0 %v425, 126
        %v582 = vpop.permute.xlu0 %581
        %vm583 = vcmp.lt.s32.totalorder %v439, 126
        %v584 = vsel %vm583, %v580, %v582
        %v585 = vsel %vm583, %v582, %v580
        %v586 = vperm.slane %v428, 6
        %v587 = vperm.slane %v429, 6
        %v588 = vmul.f32 %v584, %v586
        %v589 = vmul.f32 %v585, %v587
        %590 = vrot.lane.b32.xlu0 %v424, 114
        %v591 = vpop.permute.xlu0 %590
        %592 = vrot.lane.b32.xlu0 %v425, 114
        %v593 = vpop.permute.xlu0 %592
        %vm594 = vcmp.lt.s32.totalorder %v439, 114
        %v595 = vsel %vm594, %v591, %v593
        %v596 = vsel %vm594, %v593, %v591
        %v597 = vperm.slane %v428, 7
        %v598 = vperm.slane %v429, 7
        %v599 = vmul.f32 %v595, %v597
        %v600 = vmul.f32 %v596, %v598
        %601 = vrot.lane.b32.xlu0 %v424, 113
        %v602 = vpop.permute.xlu0 %601
        %603 = vrot.lane.b32.xlu0 %v425, 113
        %v604 = vpop.permute.xlu0 %603
        %vm605 = vcmp.lt.s32.totalorder %v439, 113
        %v606 = vsel %vm605, %v602, %v604
        %v607 = vsel %vm605, %v604, %v602
        %v608 = vperm.slane %v430, 0
        %v609 = vperm.slane %v431, 0
        %v610 = vmul.f32 %v606, %v608
        %v611 = vmul.f32 %v607, %v609
        %612 = vrot.lane.b32.xlu0 %v424, 112
        %v613 = vpop.permute.xlu0 %612
        %614 = vrot.lane.b32.xlu0 %v425, 112
        %v615 = vpop.permute.xlu0 %614
        %vm616 = vcmp.lt.s32.totalorder %v439, 112
        %v617 = vsel %vm616, %v613, %v615
        %v618 = vsel %vm616, %v615, %v613
        %v619 = vperm.slane %v430, 1
        %v620 = vperm.slane %v431, 1
        %v621 = vmul.f32 %v617, %v619
        %v622 = vmul.f32 %v618, %v620
        %623 = vrot.lane.b32.xlu0 %v424, 111
        %v624 = vpop.permute.xlu0 %623
        %625 = vrot.lane.b32.xlu0 %v425, 111
        %v626 = vpop.permute.xlu0 %625
        %vm627 = vcmp.lt.s32.totalorder %v439, 111
        %v628 = vsel %vm627, %v624, %v626
        %v629 = vsel %vm627, %v626, %v624
        %v630 = vperm.slane %v430, 2
        %v631 = vperm.slane %v431, 2
        %v632 = vmul.f32 %v628, %v630
        %v633 = vmul.f32 %v629, %v631
        %634 = vrot.lane.b32.xlu0 %v424, 110
        %v635 = vpop.permute.xlu0 %634
        %636 = vrot.lane.b32.xlu0 %v425, 110
        %v637 = vpop.permute.xlu0 %636
        %vm638 = vcmp.lt.s32.totalorder %v439, 110
        %v639 = vsel %vm638, %v635, %v637
        %v640 = vsel %vm638, %v637, %v635
        %v641 = vperm.slane %v430, 3
        %v642 = vperm.slane %v431, 3
        %v643 = vmul.f32 %v639, %v641
        %v644 = vmul.f32 %v640, %v642
        %645 = vrot.lane.b32.xlu0 %v424, 98
        %v646 = vpop.permute.xlu0 %645
        %647 = vrot.lane.b32.xlu0 %v425, 98
        %v648 = vpop.permute.xlu0 %647
        %vm649 = vcmp.lt.s32.totalorder %v439, 98
        %v650 = vsel %vm649, %v646, %v648
        %v651 = vsel %vm649, %v648, %v646
        %v652 = vperm.slane %v430, 4
        %v653 = vperm.slane %v431, 4
        %v654 = vmul.f32 %v650, %v652
        %v655 = vmul.f32 %v651, %v653
        %656 = vrot.lane.b32.xlu0 %v424, 97
        %v657 = vpop.permute.xlu0 %656
        %658 = vrot.lane.b32.xlu0 %v425, 97
        %v659 = vpop.permute.xlu0 %658
        %vm660 = vcmp.lt.s32.totalorder %v439, 97
        %v661 = vsel %vm660, %v657, %v659
        %v662 = vsel %vm660, %v659, %v657
        %v663 = vperm.slane %v430, 5
        %v664 = vperm.slane %v431, 5
        %v665 = vmul.f32 %v661, %v663
        %v666 = vmul.f32 %v662, %v664
        %667 = vrot.lane.b32.xlu0 %v424, 96
        %v668 = vpop.permute.xlu0 %667
        %669 = vrot.lane.b32.xlu0 %v425, 96
        %v670 = vpop.permute.xlu0 %669
        %vm671 = vcmp.lt.s32.totalorder %v439, 96
        %v672 = vsel %vm671, %v668, %v670
        %v673 = vsel %vm671, %v670, %v668
        %v674 = vperm.slane %v430, 6
        %v675 = vperm.slane %v431, 6
        %v676 = vmul.f32 %v672, %v674
        %v677 = vmul.f32 %v673, %v675
        %678 = vrot.lane.b32.xlu0 %v424, 95
        %v679 = vpop.permute.xlu0 %678
        %680 = vrot.lane.b32.xlu0 %v425, 95
        %v681 = vpop.permute.xlu0 %680
        %vm682 = vcmp.lt.s32.totalorder %v439, 95
        %v683 = vsel %vm682, %v679, %v681
        %v684 = vsel %vm682, %v681, %v679
        %v685 = vperm.slane %v430, 7
        %v686 = vperm.slane %v431, 7
        %v687 = vmul.f32 %v683, %v685
        %v688 = vmul.f32 %v684, %v686
        %689 = vrot.lane.b32.xlu0 %v424, 94
        %v690 = vpop.permute.xlu0 %689
        %691 = vrot.lane.b32.xlu0 %v425, 94
        %v692 = vpop.permute.xlu0 %691
        %vm693 = vcmp.lt.s32.totalorder %v439, 94
        %v694 = vsel %vm693, %v690, %v692
        %v695 = vsel %vm693, %v692, %v690
        %v696 = vperm.slane %v432, 0
        %v697 = vperm.slane %v433, 0
        %v698 = vmul.f32 %v694, %v696
        %v699 = vmul.f32 %v695, %v697
        %v700 = vpack.c.bf16 %v456, %v445
        %v701 = vpack.c.bf16 %v457, %v446
        %v702 = vpack.c.bf16 %v478, %v467
        %v703 = vpack.c.bf16 %v479, %v468
        %v704 = vpack.c.bf16 %v500, %v489
        %v705 = vpack.c.bf16 %v501, %v490
        %v706 = vpack.c.bf16 %v522, %v511
        %v707 = vpack.c.bf16 %v523, %v512
        %v708 = vpack.c.bf16 %v544, %v533
        %v709 = vpack.c.bf16 %v545, %v534
        %v710 = vpack.c.bf16 %v566, %v555
        %v711 = vpack.c.bf16 %v567, %v556
        %v712 = vpack.c.bf16 %v577, %v424
        %v713 = vpack.c.bf16 %v578, %v425
        %v714 = vpack.c.bf16 %v599, %v588
        %v715 = vpack.c.bf16 %v600, %v589
        %v716 = vpack.c.bf16 %v621, %v610
        %v717 = vpack.c.bf16 %v622, %v611
        %v718 = vpack.c.bf16 %v643, %v632
        %v719 = vpack.c.bf16 %v644, %v633
        %v720 = vpack.c.bf16 %v665, %v654
        %v721 = vpack.c.bf16 %v666, %v655
        %v722 = vpack.c.bf16 %v687, %v676
        %v723 = vpack.c.bf16 %v688, %v677
        %v724 = vpack.c.bf16 %v698, %v698
        %v725 = vpack.c.bf16 %v699, %v699
        %v726 = vld [vmem:[%s2] sm:$0xff]
        %727 = vset.pattern.permute.xlu0 2
        %728 = vperm.xlu0 %727, %v349
        %v729 = vpop.permute.xlu0 %728
        %v732 = vunpack.c.l.b16 %v726
        %v733 = vunpack.c.h.b16 %v726
        %v734 = vpack.c.b16 %v732, %v732
        %v735 = vpack.c.b16 %v733, %v733
        %vm737 = vcmask 588800
        %v739 = vsel %vm737, %v735, 0
        %vm741 = vcmask 1043456
        %v743 = vsel %vm741, %v724, 0
        %v746 = vsel %vm741, %v725, 0
        %748 = vmatpush.bf16.msra.mxu0 %v714
        %749 = vmatpush.bf16.msra.mxu0 %v712
        %750 = vmatpush.bf16.msra.mxu0 %v710
        %751 = vmatpush.bf16.msra.mxu0 %v708
        %752 = vmatpush.bf16.msra.mxu0 %v706
        %753 = vmatpush.bf16.msra.mxu0 %v704
        %754 = vmatpush.bf16.msra.mxu0 %v702
        %755 = vmatpush.bf16.msra.mxu0 %v700
        %756 = vmatmul.bf16.gmra.mxu0 %v734
        %v757 = vpop.f32.mrf.mxu0
        %v758 = vadd.f32 %v729, %v757
        %v759 = vpop.f32.mrf.mxu0
        %760 = vdwg.mxu0
        %761 = vmatpush.bf16.msra.mxu0 0
        %762 = vmatpush.bf16.msra.mxu0 0
        %763 = vmatpush.bf16.msra.mxu0 0
        %764 = vmatpush.bf16.msra.mxu0 %v743
        %765 = vmatpush.bf16.msra.mxu0 %v722
        %766 = vmatpush.bf16.msra.mxu0 %v720
        %767 = vmatpush.bf16.msra.mxu0 %v718
        %768 = vmatpush.bf16.msra.mxu0 %v716
        %769 = vmatmul.bf16.gmra.mxu0 %v739
        %v770 = vpop.f32.mrf.mxu0
        %v771 = vadd.f32 %v758, %v770
        %v772 = vpop.f32.mrf.mxu0
        %773 = vdwg.mxu0
        %774 = vmatpush.bf16.msra.mxu0 %v715
        %775 = vmatpush.bf16.msra.mxu0 %v713
        %776 = vmatpush.bf16.msra.mxu0 %v711
        %777 = vmatpush.bf16.msra.mxu0 %v709
        %778 = vmatpush.bf16.msra.mxu0 %v707
        %779 = vmatpush.bf16.msra.mxu0 %v705
        %780 = vmatpush.bf16.msra.mxu0 %v703
        %781 = vmatpush.bf16.msra.mxu0 %v701
        %782 = vmatmul.bf16.gmra.mxu0 %v734
        %v783 = vpop.f32.mrf.mxu0
        %v784 = vadd.f32 %v729, %v783
        %v785 = vpop.f32.mrf.mxu0
        %786 = vdwg.mxu0
        %787 = vmatpush.bf16.msra.mxu0 0
        %788 = vmatpush.bf16.msra.mxu0 0
        %789 = vmatpush.bf16.msra.mxu0 0
        %790 = vmatpush.bf16.msra.mxu0 %v746
        %791 = vmatpush.bf16.msra.mxu0 %v723
        %792 = vmatpush.bf16.msra.mxu0 %v721
        %793 = vmatpush.bf16.msra.mxu0 %v719
        %794 = vmatpush.bf16.msra.mxu0 %v717
        %795 = vmatmul.bf16.gmra.mxu0 %v739
        %v796 = vpop.f32.mrf.mxu0
        %v797 = vadd.f32 %v784, %v796
        %v798 = vpop.f32.mrf.mxu0
        %799 = vdwg.mxu0
        %v800 = vrot.slane %v771, 4
        %v801 = vrot.slane %v797, 4
        %v802 = vmul.f32 %v771, %v800
        %v803 = vmul.f32 %v797, %v801
        %v804 = vld [vmem:[%s3] sm:$0xff]
        %805 = vset.pattern.permute.xlu0 3
        %806 = vperm.xlu0 %805, %v349
        %v807 = vpop.permute.xlu0 %806
        %vm809 = vcmask 64512
        %v811 = vsel %vm809, %v804, 0
        %813 = vmatpush.msra.mxu0 0.0
        %814 = vmatpush.msra.mxu0 0.0
        %815 = vmatpush.msra.mxu0 0.0
        %816 = vmatpush.msra.mxu0 0.0
        %817 = vmatpush.msra.mxu0 0.0
        %818 = vmatpush.msra.mxu0 0.0
        %819 = vmatpush.msra.mxu0 0.0
        %820 = vmatpush.msra.mxu0 0.0
        %821 = vmatpush.msra.mxu0 0.0
        %822 = vmatpush.msra.mxu0 0.0
        %823 = vmatpush.msra.mxu0 0.0
        %824 = vmatpush.msra.mxu0 0.0
        %825 = vmatpush.msra.mxu0 0.0
        %826 = vmatpush.msra.mxu0 0.0
        %827 = vmatpush.msra.mxu0 0.0
        %828 = vmatpush.msra.mxu0 %v802
        %829 = vmatmul.f32.gmra.mxu0 %v811
        %v830 = vpop.f32.mrf.mxu0
        %v831 = vadd.f32 %v807, %v830
        %832 = vdwg.mxu0
        %833 = vmatpush.msra.mxu0 0.0
        %834 = vmatpush.msra.mxu0 0.0
        %835 = vmatpush.msra.mxu0 0.0
        %836 = vmatpush.msra.mxu0 0.0
        %837 = vmatpush.msra.mxu0 0.0
        %838 = vmatpush.msra.mxu0 0.0
        %839 = vmatpush.msra.mxu0 0.0
        %840 = vmatpush.msra.mxu0 0.0
        %841 = vmatpush.msra.mxu0 0.0
        %842 = vmatpush.msra.mxu0 0.0
        %843 = vmatpush.msra.mxu0 0.0
        %844 = vmatpush.msra.mxu0 0.0
        %845 = vmatpush.msra.mxu0 0.0
        %846 = vmatpush.msra.mxu0 0.0
        %847 = vmatpush.msra.mxu0 0.0
        %848 = vmatpush.msra.mxu0 %v803
        %849 = vmatmul.f32.gmra.mxu0 %v811
        %v850 = vpop.f32.mrf.mxu0
        %v851 = vadd.f32 %v807, %v850
        %852 = vdwg.mxu0
        %v853 = vadd.f32 %v831, %v347
        %v854 = vadd.f32 %v851, %v348
        %v855 = vrot.slane %v853, 4
        %v856 = vadd.f32 %v853, %v855
        %v857 = vrot.slane %v856, 2
        %v858 = vadd.f32 %v856, %v857
        %v859 = vrot.slane %v858, 1
        %v860 = vadd.f32 %v858, %v859
        %v861 = vrot.slane %v854, 4
        %v862 = vadd.f32 %v854, %v861
        %v863 = vrot.slane %v862, 2
        %v864 = vadd.f32 %v862, %v863
        %v865 = vrot.slane %v864, 1
        %v866 = vadd.f32 %v864, %v865
        %v867 = vmul.f32 %v860, %v368
        %v868 = vmul.f32 %v866, %v368
        %v869 = vsub.f32 %v853, %v867
        %v870 = vsub.f32 %v854, %v868
        %v871 = vmul.f32 %v869, %v869
        %v872 = vmul.f32 %v870, %v870
        %v873 = vrot.slane %v871, 4
        %v874 = vadd.f32 %v871, %v873
        %v875 = vrot.slane %v874, 2
        %v876 = vadd.f32 %v874, %v875
        %v877 = vrot.slane %v876, 1
        %v878 = vadd.f32 %v876, %v877
        %v879 = vrot.slane %v872, 4
        %v880 = vadd.f32 %v872, %v879
        %v881 = vrot.slane %v880, 2
        %v882 = vadd.f32 %v880, %v881
        %v883 = vrot.slane %v882, 1
        %v884 = vadd.f32 %v882, %v883
        %v885 = vmul.f32 %v878, %v368
        %v886 = vmul.f32 %v884, %v368
        %v887 = vadd.f32 %v885, 1e-06
        %v888 = vadd.f32 %v886, 1e-06
        %v889 = vrsqrt.pop %v887
        %v890 = vmul.f32 %v889, %v887
        %v891 = vmul.f32 %v890, %v889
        %v892 = vmul.f32 0.5, %v891
        %v893 = vsub.f32 1.5, %v892
        %v894 = vmul.f32 %v889, %v893
        %vm895 = vweird.f32 %v887
        %vm896 = vweird.f32 %v889
        %vm897 = vmor %vm895, %vm896
        %v898 = vsel %vm897, %v889, %v894
        %v899 = vrsqrt.pop %v888
        %v900 = vmul.f32 %v899, %v888
        %v901 = vmul.f32 %v900, %v899
        %v902 = vmul.f32 0.5, %v901
        %v903 = vsub.f32 1.5, %v902
        %v904 = vmul.f32 %v899, %v903
        %vm905 = vweird.f32 %v888
        %vm906 = vweird.f32 %v899
        %vm907 = vmor %vm905, %vm906
        %v908 = vsel %vm907, %v899, %v904
        %v909 = vmul.f32 %v869, %v898
        %v910 = vmul.f32 %v870, %v908
        %911 = vset.pattern.permute.xlu0 4
        %912 = vperm.xlu0 %911, %v349
        %v913 = vpop.permute.xlu0 %912
        %v915 = vmul.f32 %v909, %v913
        %v916 = vmul.f32 %v910, %v913
        %917 = vset.pattern.permute.xlu0 5
        %918 = vperm.xlu0 %917, %v349
        %v919 = vpop.permute.xlu0 %918
        %v921 = vadd.f32 %v915, %v919
        %v922 = vadd.f32 %v916, %v919
        %v923 = vld [vmem:[%s4] sm:$0xff]
        %v924 = vld [vmem:[%s4 + $0x8] sm:$0x1]
        %v925 = vadd.f32 %v921, %v922
        %926 = vadd.xlane.f32.xlu0 %v925
        %v927 = vpop.xlane.xlu0 %926
        %v928 = vrcp.pop 256.0
        %v929 = vmul.f32 256.0, %v928
        %v930 = vsub.f32 1.0, %v929
        %v931 = vmul.f32 %v928, %v930
        %v932 = vadd.f32 %v928, %v931
        %vm933 = vweird.f32 %v928
        %v934 = vsel %vm933, %v928, %v932
        %v935 = vmul.f32 %v927, %v934
        %v936 = vmul.f32 %v923, %v935
        %vm937 = vcmask 31744
        %v938 = vsel %vm937, %v936, 0.0
        %v939 = vrot.slane %v938, 4
        %v940 = vadd.f32 %v938, %v939
        %v941 = vrot.slane %v940, 2
        %v942 = vadd.f32 %v940, %v941
        %v943 = vrot.slane %v942, 1
        %v944 = vadd.f32 %v942, %v943
        %v945 = vadd.f32 %v944, %v924
        %vm946 = vcmp.ge.f32.partialorder %v945, 0.0
        %v947 = vmul.f32 %v945, 0.1
        %v948 = vsel %vm946, %v945, %v947
        %v949 = vperm.slane %v948, 0
        %951 = vrot.lane.b32.xlu0 %v949, 4
        %v952 = vpop.permute.xlu0 %951
        %v954 = vmul.f32 %v923, %v952
        %956 = vrot.lane.b32.xlu0 %v954, 124
        %v957 = vpop.permute.xlu0 %956
        %v959 = vsel %vm937, %v957, 0.0
        %960 = vadd.xlane.f32.xlu0 %v959
        %v961 = vpop.xlane.xlu0 %960
        %v962 = vadd.f32 %v961, %v349
        %v963 = vxor.u32 %v962, 2147483648
        %v964 = vmul.f32 %v963, 1.442695
        %v965 = vpow.pop %v964
        %v966 = vadd.f32 %v965, 1.0
        %v967 = vrcp.pop %v966
        %v968 = vmul.f32 %v966, %v967
        %v969 = vsub.f32 1.0, %v968
        %v970 = vmul.f32 %v967, %v969
        %v971 = vadd.f32 %v967, %v970
        %vm972 = vweird.f32 %v966
        %vm973 = vweird.f32 %v967
        %vm974 = vmor %vm972, %vm973
        %v975 = vsel %vm974, %v967, %v971
        %v976 = vand.u32 2147483647, %v966
        %vm977 = vcmp.eq.f32.partialorder %v976, 8.507059e+37
        %v978 = vand.u32 %v966, 2147483648
        %v979 = vor.u32 1.1754944e-38, %v978
        %v980 = vsel %vm977, %v979, %v975
        %v981 = vmul.f32 1.0, %v980
        %983 = vset.pattern.permute.xlu0 6
        %984 = vperm.xlu0 %983, %v981
        %v985 = vpop.permute.xlu0 %984
        %v987 = vmul.f32 %v921, %v985
        %v988 = vmul.f32 %v922, %v985
        %v989 = vld [vmem:[%s5] sm:$0xf]
        %v990 = vld [vmem:[%s5 + $0x4] sm:$0xf]
        %v991 = vld [vmem:[%s5 + $0x8] sm:$0xf]
        %v992 = vld [vmem:[%s5 + $0xc] sm:$0xf]
        %v993 = vld [vmem:[%s5 + $0x10] sm:$0xf]
        %v994 = vld [vmem:[%s5 + $0x14] sm:$0xf]
        %v995 = vld [vmem:[%s5 + $0x18] sm:$0xf]
        %v996 = vld [vmem:[%s5 + $0x1c] sm:$0xf]
        %v997 = vpack.c.bf16 %v987, %v987
        %v998 = vpack.c.bf16 %v988, %v988
        %v999 = vld [vmem:[%s6] sm:$0xff]
        %v1000 = vld [vmem:[%s6 + $0x8] sm:$0xff]
        %v1001 = vld [vmem:[%s6 + $0x10] sm:$0xff]
        %v1002 = vld [vmem:[%s6 + $0x18] sm:$0xff]
        %v1003 = vld [vmem:[%s6 + $0x20] sm:$0xff]
        %v1004 = vld [vmem:[%s6 + $0x28] sm:$0xff]
        %v1005 = vld [vmem:[%s6 + $0x30] sm:$0xff]
        %v1006 = vld [vmem:[%s6 + $0x38] sm:$0xff]
        %1008 = vset.pattern.permute.xlu0 0
        %1009 = vperm.xlu0 %1008, %v999
        %v1010 = vpop.permute.xlu0 %1009
        %1013 = vset.pattern.permute.xlu0 0
        %1014 = vperm.xlu0 %1013, %v1000
        %v1015 = vpop.permute.xlu0 %1014
        %1018 = vset.pattern.permute.xlu0 0
        %1019 = vperm.xlu0 %1018, %v1001
        %v1020 = vpop.permute.xlu0 %1019
        %1023 = vset.pattern.permute.xlu0 0
        %1024 = vperm.xlu0 %1023, %v1002
        %v1025 = vpop.permute.xlu0 %1024
        %1028 = vset.pattern.permute.xlu0 0
        %1029 = vperm.xlu0 %1028, %v1003
        %v1030 = vpop.permute.xlu0 %1029
        %1033 = vset.pattern.permute.xlu0 0
        %1034 = vperm.xlu0 %1033, %v1004
        %v1035 = vpop.permute.xlu0 %1034
        %1038 = vset.pattern.permute.xlu0 0
        %1039 = vperm.xlu0 %1038, %v1005
        %v1040 = vpop.permute.xlu0 %1039
        %1043 = vset.pattern.permute.xlu0 0
        %1044 = vperm.xlu0 %1043, %v1006
        %v1045 = vpop.permute.xlu0 %1044
        %v1055 = vunpack.c.l.b16 %v989
        %v1056 = vunpack.c.l.b16 %v990
        %v1057 = vunpack.c.l.b16 %v991
        %v1058 = vunpack.c.l.b16 %v992
        %v1059 = vunpack.c.l.b16 %v993
        %v1060 = vunpack.c.l.b16 %v994
        %v1061 = vunpack.c.l.b16 %v995
        %v1062 = vunpack.c.l.b16 %v996
        %v1063 = vpack.c.b16 %v1056, %v1055
        %v1064 = vpack.c.b16 %v1058, %v1057
        %v1065 = vpack.c.b16 %v1060, %v1059
        %v1066 = vpack.c.b16 %v1062, %v1061
        %v1068 = vsel %vm809, %v1063, 0
        %v1071 = vsel %vm809, %v1064, 0
        %v1074 = vsel %vm809, %v1065, 0
        %v1077 = vsel %vm809, %v1066, 0
        %v1080 = vsel %vm741, %v997, 0
        %v1083 = vsel %vm741, %v998, 0
        %1085 = vmatpush.bf16.msra.mxu0 0
        %1086 = vmatpush.bf16.msra.mxu0 0
        %1087 = vmatpush.bf16.msra.mxu0 0
        %1088 = vmatpush.bf16.msra.mxu0 0
        %1089 = vmatpush.bf16.msra.mxu0 0
        %1090 = vmatpush.bf16.msra.mxu0 0
        %1091 = vmatpush.bf16.msra.mxu0 0
        %1092 = vmatpush.bf16.msra.mxu0 %v1080
        %1093 = vmatmul.bf16.gmra.mxu0 %v1068
        %v1094 = vpop.f32.mrf.mxu0
        %v1095 = vadd.f32 %v1010, %v1094
        %v1096 = vpop.f32.mrf.mxu0
        %v1097 = vadd.f32 %v1015, %v1096
        %1098 = vmatmul.bf16.gmra.mxu0 %v1071
        %v1099 = vpop.f32.mrf.mxu0
        %v1100 = vadd.f32 %v1020, %v1099
        %v1101 = vpop.f32.mrf.mxu0
        %v1102 = vadd.f32 %v1025, %v1101
        %1103 = vmatmul.bf16.gmra.mxu0 %v1074
        %v1104 = vpop.f32.mrf.mxu0
        %v1105 = vadd.f32 %v1030, %v1104
        %v1106 = vpop.f32.mrf.mxu0
        %v1107 = vadd.f32 %v1035, %v1106
        %1108 = vmatmul.bf16.gmra.mxu0 %v1077
        %v1109 = vpop.f32.mrf.mxu0
        %v1110 = vadd.f32 %v1040, %v1109
        %v1111 = vpop.f32.mrf.mxu0
        %v1112 = vadd.f32 %v1045, %v1111
        %1113 = vdwg.mxu0
        %1114 = vmatpush.bf16.msra.mxu0 0
        %1115 = vmatpush.bf16.msra.mxu0 0
        %1116 = vmatpush.bf16.msra.mxu0 0
        %1117 = vmatpush.bf16.msra.mxu0 0
        %1118 = vmatpush.bf16.msra.mxu0 0
        %1119 = vmatpush.bf16.msra.mxu0 0
        %1120 = vmatpush.bf16.msra.mxu0 0
        %1121 = vmatpush.bf16.msra.mxu0 %v1083
        %1122 = vmatmul.bf16.gmra.mxu0 %v1068
        %v1123 = vpop.f32.mrf.mxu0
        %v1124 = vadd.f32 %v1010, %v1123
        %v1125 = vpop.f32.mrf.mxu0
        %v1126 = vadd.f32 %v1015, %v1125
        %1127 = vmatmul.bf16.gmra.mxu0 %v1071
        %v1128 = vpop.f32.mrf.mxu0
        %v1129 = vadd.f32 %v1020, %v1128
        %v1130 = vpop.f32.mrf.mxu0
        %v1131 = vadd.f32 %v1025, %v1130
        %1132 = vmatmul.bf16.gmra.mxu0 %v1074
        %v1133 = vpop.f32.mrf.mxu0
        %v1134 = vadd.f32 %v1030, %v1133
        %v1135 = vpop.f32.mrf.mxu0
        %v1136 = vadd.f32 %v1035, %v1135
        %1137 = vmatmul.bf16.gmra.mxu0 %v1077
        %v1138 = vpop.f32.mrf.mxu0
        %v1139 = vadd.f32 %v1040, %v1138
        %v1140 = vpop.f32.mrf.mxu0
        %v1141 = vadd.f32 %v1045, %v1140
        %1142 = vdwg.mxu0
        %v1143 = vmul.f32 %v1095, %v1105
        %v1144 = vmul.f32 %v1124, %v1134
        %v1145 = vmul.f32 %v1097, %v1107
        %v1146 = vmul.f32 %v1126, %v1136
        %v1147 = vmul.f32 %v1100, %v1110
        %v1148 = vmul.f32 %v1129, %v1139
        %v1149 = vmul.f32 %v1102, %v1112
        %v1150 = vmul.f32 %v1131, %v1141
        %v1151 = vld [vmem:[#allocation2] sm:$0xff]
        %1152 = vset.pattern.permute.xlu0 7
        %1153 = vperm.xlu0 %1152, %v349
        %v1154 = vpop.permute.xlu0 %1153
        %vm1156 = vcmask 261120
        %v1158 = vsel %vm1156, %v1151, 0
        %1160 = vmatpush.msra.mxu0 0.0
        %1161 = vmatpush.msra.mxu0 0.0
        %1162 = vmatpush.msra.mxu0 0.0
        %1163 = vmatpush.msra.mxu0 0.0
        %1164 = vmatpush.msra.mxu0 0.0
        %1165 = vmatpush.msra.mxu0 0.0
        %1166 = vmatpush.msra.mxu0 0.0
        %1167 = vmatpush.msra.mxu0 0.0
        %1168 = vmatpush.msra.mxu0 0.0
        %1169 = vmatpush.msra.mxu0 0.0
        %1170 = vmatpush.msra.mxu0 0.0
        %1171 = vmatpush.msra.mxu0 0.0
        %1172 = vmatpush.msra.mxu0 %v1149
        %1173 = vmatpush.msra.mxu0 %v1147
        %1174 = vmatpush.msra.mxu0 %v1145
        %1175 = vmatpush.msra.mxu0 %v1143
        %1176 = vmatmul.f32.gmra.mxu0 %v1158
        %v1177 = vpop.f32.mrf.mxu0
        %v1178 = vadd.f32 %v1154, %v1177
        %1179 = vdwg.mxu0
        %1180 = vmatpush.msra.mxu0 0.0
        %1181 = vmatpush.msra.mxu0 0.0
        %1182 = vmatpush.msra.mxu0 0.0
        %1183 = vmatpush.msra.mxu0 0.0
        %1184 = vmatpush.msra.mxu0 0.0
        %1185 = vmatpush.msra.mxu0 0.0
        %1186 = vmatpush.msra.mxu0 0.0
        %1187 = vmatpush.msra.mxu0 0.0
        %1188 = vmatpush.msra.mxu0 0.0
        %1189 = vmatpush.msra.mxu0 0.0
        %1190 = vmatpush.msra.mxu0 0.0
        %1191 = vmatpush.msra.mxu0 0.0
        %1192 = vmatpush.msra.mxu0 %v1150
        %1193 = vmatpush.msra.mxu0 %v1148
        %1194 = vmatpush.msra.mxu0 %v1146
        %1195 = vmatpush.msra.mxu0 %v1144
        %1196 = vmatmul.f32.gmra.mxu0 %v1158
        %v1197 = vpop.f32.mrf.mxu0
        %v1198 = vadd.f32 %v1154, %v1197
        %1199 = vdwg.mxu0
        %v1200 = vadd.f32 %v1178, %v853
        %v1201 = vadd.f32 %v1198, %v854
        %1202 = vst [vmem:[%s340] sm:$0xff] %v1200
        %1203 = vst [vmem:[%s340 + $0x8] sm:$0xff] %v1201
        %s1204 = sand.u32 %s226, 1
        %s1205 = scalar_lea.sflag [#allocation4], %s1204
        %s1206 = sand.u32 %s226, 1
        %s1207 = smul.addr %s1206, 16
        %s1208 = scalar_lea.vmem [#allocation5], %s1207
        // Predicated region
        $region61: #{tpu_custom_call.1} parent=55 // pred_check
          %p1209 = pneg %p236
        $region62: #{tpu_custom_call.1} parent=55 // pred_check_branch
          %1211 = sbr.rel (%p1209) target = $region64
        $region63: #{tpu_custom_call.1} parent=55 // pred_region
          %1213 = vsyncadd %s1205, 0
          %s1214 = smul.addr %s24, 2
          %s1215 = smul.addr %s1214, 8
          %s1216 = scalar_lea.hbm %s9, %s1215
          %s1218 = sshll.u32 %s1208, 4
          %s1219 = int_to_ptr.vmem [resolvable:$true] %s1218
          %s1220 = sshll.u32 %s1216, 4
          %s1221 = int_to_ptr.hbm [resolvable:$true] %s1220
          %1223 = dma.vmem_to_hbm [thread:$0]  %s1219, 256, %s1221, %s1205
        $region64: #{tpu_custom_call.1} parent=55 // pred_fallthru
          _
      $region56: #{tpu_custom_call.1} parent=5 // pred_fallthru
        _
      %p1224 = scmp.le.s32.totalorder 2, %s19
      // Predicated region
      $region65: #{tpu_custom_call.1} parent=5 // pred_check
        %p1225 = pneg %p1224
      $region66: #{tpu_custom_call.1} parent=5 // pred_check_branch
        %1227 = sbr.rel (%p1225) target = $region68
      $region67: #{tpu_custom_call.1} parent=5 // pred_region
        %s1228 = ssub.s32 %s19, 2
        // Predicated region
        $region69: #{tpu_custom_call.1} parent=67 // pred_check
          %p1229 = pneg %p242
        $region70: #{tpu_custom_call.1} parent=67 // pred_check_branch
          %1231 = sbr.rel (%p1229) target = $region72
        $region71: #{tpu_custom_call.1} parent=67 // pred_region
          %s1232 = sand.u32 %s227, 1
          %s1233 = scalar_lea.sflag [#allocation4], %s1232
          %s1234 = sand.u32 %s227, 1
          %s1235 = smul.addr %s1234, 16
          %s1236 = scalar_lea.vmem [#allocation5], %s1235
          %1238 = dma.done %s1233, 256
        $region72: #{tpu_custom_call.1} parent=67 // pred_fallthru
          _
      $region68: #{tpu_custom_call.1} parent=5 // pred_fallthru
        _
    $region6: #{tpu_custom_call.1} parent=1 // loop_footer
      %s23 = sadd.s32 1, %s19
    $region7: #{tpu_custom_call.1} parent=1 // loop_footer_branch
      %18 = sbr.rel target = $region3
    $region8: #{tpu_custom_call.1} parent=1 // loop_exit
      _
    %1239 = vsyncpa [#allocation3], 1
    %s1240 = scalar_lea.sflag [#allocation3], 1
    %1241 = vsyncpa %s1240, 1
    %1242 = vsyncpa [#allocation4], 1
    %s1243 = scalar_lea.sflag [#allocation4], 1
    %1244 = vsyncpa %s1243, 1

</llo_original>
